<compile_context>
chip_gen: v6e
topology: v6e:2x2x1
jax: 0.10.0
libtpu: 0.0.40
codegen_flags: <defaults>
</compile_context>

<pallas_src>
import functools

import jax
import jax.numpy as jnp
from jax.experimental import pallas as pl
from jax.experimental.pallas import tpu as pltpu

NEG_SLOPE = 0.01   # F.leaky_relu default
NEG_INF = -1e30


def _ggat_kernel(num_heads, hidden_dim,
                 adj_bias_ref, h_ref,
                 wf1_ref, wf2_ref, wf3_ref, wf4_ref,
                 gru_wih_ref, gru_b_ref,
                 w5_ref, b5_ref,
                 out_ref):
    adj_bias = adj_bias_ref[...]                     # (N, N) f32 additive mask
    n_nodes = adj_bias.shape[0]

    gru_wih = gru_wih_ref[...]                       # (Dh, 3Dh) bf16
    gru_b = gru_b_ref[...]                           # (2, 3Dh)  f32
    b_ih = gru_b[0:1, :]
    b_hh = gru_b[1:2, :]

    def gat_aggregate(full, heads):
        """Masked-softmax attention + mean merge over heads.

        full : (N, heads*Dh + 2*heads [+ 3*Dh])  output of the wide matmul
        """
        hd = heads * hidden_dim
        z_all = full[:, :hd]                                        # (N, H*Dh)
        e_src = full[:, hd:hd + heads]                              # (N, H)
        e_dst = full[:, hd + heads:hd + 2 * heads]                  # (N, H)
        e_src_t = e_src.T                                           # (H, N) one XLU transpose/layer

        merged = None
        for k in range(heads):
            # e[i, j] = leaky_relu(a_dst . z_i + a_src . z_j), softmax over j
            e = e_dst[:, k:k + 1] + e_src_t[k:k + 1, :]             # (N, N)
            e = jnp.where(e > 0, e, NEG_SLOPE * e)
            e = e + adj_bias                                        # masked entries -> ~ -1e30
            m = jnp.max(e, axis=1, keepdims=True)
            p = jnp.exp(e - m)                                      # masked entries underflow to 0
            alpha = p * pl.reciprocal(jnp.sum(p, axis=1, keepdims=True), approx=True)
            z_k = z_all[:, k * hidden_dim:(k + 1) * hidden_dim]     # (N, Dh)
            contrib = jnp.dot(alpha.astype(jnp.bfloat16),
                              z_k.astype(jnp.bfloat16),
                              preferred_element_type=jnp.float32)
            merged = contrib if merged is None else merged + contrib
        return merged * (1.0 / float(heads))                        # multi-head mean merge

    def gru_cell(x, h_prev, gh_raw):
        """nn.GRUCell(x=gat_out, hidden=h_prev); gh_raw = h_prev @ W_hh^T (from wide matmul)."""
        dh = hidden_dim
        gh = gh_raw + b_hh
        gi = jnp.dot(x.astype(jnp.bfloat16), gru_wih,
                     preferred_element_type=jnp.float32) + b_ih
        r = jax.nn.sigmoid(gi[:, :dh] + gh[:, :dh])
        zg = jax.nn.sigmoid(gi[:, dh:2 * dh] + gh[:, dh:2 * dh])
        nh = jnp.tanh(gi[:, 2 * dh:] + r * gh[:, 2 * dh:])
        return (1.0 - zg) * nh + zg * h_prev

    def layer(h_in, wf_ref, heads, require_gru):
        # One wide matmul: head projections + attention scores (+ GRU hidden gates).
        full = jnp.dot(h_in.astype(jnp.bfloat16), wf_ref[...],
                       preferred_element_type=jnp.float32)
        x = gat_aggregate(full, heads)
        # dropout: identity (inference)
        if require_gru:
            gh_raw = full[:, heads * hidden_dim + 2 * heads:]        # (N, 3Dh)
            x = gru_cell(x, h_in, gh_raw)
        return x

    h0 = h_ref[...]                                                  # (N, Din)
    h1 = layer(h0, wf1_ref, num_heads, require_gru=False)
    h2 = layer(h1, wf2_ref, num_heads, require_gru=True)
    h3 = layer(h2, wf3_ref, num_heads, require_gru=True)
    h4 = layer(h3, wf4_ref, 1, require_gru=True)

    logits = jnp.dot(h4.astype(jnp.bfloat16), w5_ref[...],
                     preferred_element_type=jnp.float32) + b5_ref[...]
    out_ref[...] = jax.nn.sigmoid(logits)
    del n_nodes  # (kept for clarity; not otherwise needed)


def _pack_layer(W, a, whh_t=None):
    """Build the per-layer fused weight  Wfull = [Wcat | Wcat@Acat | W_hh^T]  (bf16).

    W     : (H, Din, Dh) f32 head weights
    a     : (H, 2*Dh)    f32 attention vectors ([a_src | a_dst] per head)
    whh_t : (Dh, 3Dh)    f32 GRU hidden weight (pre-transposed), or None
    """
    num_heads, din, dout = W.shape
    wcat = jnp.transpose(W, (1, 0, 2)).reshape(din, num_heads * dout)   # (Din, H*Dh)
    a_src = a[:, :dout]                                                 # (H, Dh)
    a_dst = a[:, dout:]                                                 # (H, Dh)
    eye = jnp.eye(num_heads, dtype=W.dtype)
    src_blk = (a_src[:, :, None] * eye[:, None, :]).reshape(num_heads * dout, num_heads)
    dst_blk = (a_dst[:, :, None] * eye[:, None, :]).reshape(num_heads * dout, num_heads)
    acat = jnp.concatenate([src_blk, dst_blk], axis=1)                  # (H*Dh, 2H)
    wa = wcat @ acat                                                    # (Din, 2H): fused score weights
    parts = [wcat, wa]
    if whh_t is not None:
        parts.append(whh_t)                                             # (Din == Dh, 3Dh)
    return jnp.concatenate(parts, axis=1).astype(jnp.bfloat16)


def ggat_res_forward(adj, h, params):
    """Full GGAT_RES forward in one pallas_call (whole graph resident in VMEM)."""
    n_nodes = h.shape[0]
    hidden_dim = params["W1"].shape[2]
    num_heads = params["W1"].shape[0]
    out_dim = params["W5"].shape[0]

    # Host-side precompute (free): additive mask, fused per-layer weights,
    # pre-transposed GRU / output weights, packed biases.
    adj_bias = jnp.where(adj > 0, 0.0, NEG_INF).astype(jnp.float32)

    gru_whh_t = params["gru_whh"].T                                          # (Dh, 3Dh) f32
    wf1 = _pack_layer(params["W1"], params["a1"])                            # layer1: no GRU
    wf2 = _pack_layer(params["W2"], params["a2"], gru_whh_t)
    wf3 = _pack_layer(params["W3"], params["a3"], gru_whh_t)
    wf4 = _pack_layer(params["W4"], params["a4"], gru_whh_t)

    gru_wih_t = params["gru_wih"].T.astype(jnp.bfloat16)                     # (Dh, 3Dh)
    gru_b = jnp.concatenate([params["gru_bih"], params["gru_bhh"]], axis=0)  # (2, 3Dh) f32
    w5_t = params["W5"].T.astype(jnp.bfloat16)                               # (Dh, out_dim)
    b5 = params["b5"]                                                        # (1, out_dim)

    args = (adj_bias, h,
            wf1, wf2, wf3, wf4,
            gru_wih_t, gru_b,
            w5_t, b5)

    vmem = pl.BlockSpec(memory_space=pltpu.MemorySpace.VMEM)
    kernel = functools.partial(_ggat_kernel, num_heads, hidden_dim)

    # TODO(synk): for large graphs, split into per-layer pallas_calls with a
    # dst-node-block grid ("parallel" axis for megacore) and a flash-style
    # masked softmax over src blocks instead of keeping the whole (N, N) mask
    # plus (N, N) temporaries resident in VMEM.
    return pl.pallas_call(
        kernel,
        out_shape=jax.ShapeDtypeStruct((n_nodes, out_dim), jnp.float32),
        in_specs=[vmem] * len(args),
        out_specs=vmem,
    )(*args)


def init_params(key, in_dim, hidden_dim, out_dim, num_heads):
    keys = jax.random.split(key, 16)
    s = 0.1

    def nrm(k, shape):
        return (s * jax.random.normal(k, shape)).astype(jnp.float32)

    params = {
        # layer1: in_dim -> hidden, num_heads heads
        "W1": nrm(keys[0], (num_heads, in_dim, hidden_dim)),
        "a1": nrm(keys[1], (num_heads, 2 * hidden_dim)),
        # layers 2,3: hidden -> hidden, num_heads heads
        "W2": nrm(keys[2], (num_heads, hidden_dim, hidden_dim)),
        "a2": nrm(keys[3], (num_heads, 2 * hidden_dim)),
        "W3": nrm(keys[4], (num_heads, hidden_dim, hidden_dim)),
        "a3": nrm(keys[5], (num_heads, 2 * hidden_dim)),
        # layer4: hidden -> hidden, 1 head
        "W4": nrm(keys[6], (1, hidden_dim, hidden_dim)),
        "a4": nrm(keys[7], (1, 2 * hidden_dim)),
        # shared GRUSubLayer (nn.GRUCell(hidden, hidden))
        "gru_wih": nrm(keys[8], (3 * hidden_dim, hidden_dim)),
        "gru_whh": nrm(keys[9], (3 * hidden_dim, hidden_dim)),
        "gru_bih": nrm(keys[10], (1, 3 * hidden_dim)),
        "gru_bhh": nrm(keys[11], (1, 3 * hidden_dim)),
        # layer5: Linear(hidden, out_dim, bias=True)
        "W5": nrm(keys[12], (out_dim, hidden_dim)),
        "b5": nrm(keys[13], (1, out_dim)),
    }
    return params


if __name__ == "__main__":
    N = 16          # number of graph nodes
    IN_DIM = 8
    HIDDEN = 32
    OUT_DIM = 1
    NUM_HEADS = 4

    key = jax.random.PRNGKey(0)
    k_adj, k_h, k_p = jax.random.split(key, 3)

    # random sparse-ish directed graph + self loops, as dense adjacency
    # (self-loops are REQUIRED: they keep every softmax row's max finite)
    adj = (jax.random.uniform(k_adj, (N, N)) < 0.3).astype(jnp.float32)
    adj = jnp.maximum(adj, jnp.eye(N, dtype=jnp.float32))

    h = jax.random.normal(k_h, (N, IN_DIM), dtype=jnp.float32)
    params = init_params(k_p, IN_DIM, HIDDEN, OUT_DIM, NUM_HEADS)

    out = ggat_res_forward(adj, h, params)
    out = jax.block_until_ready(out)

    assert out.shape == (N, OUT_DIM)
    assert bool(jnp.all(jnp.isfinite(out)))
    assert bool(jnp.all((out >= 0.0) & (out <= 1.0)))
    print("KERNEL_OK")
</pallas_src>

<mosaic_0001>
module attributes {stable_mosaic.version = 11 : i64} {
  func.func @_ggat_kernel(%arg0: memref<16x16xf32, #tpu.memory_space<vmem>>, %arg1: memref<16x8xf32, #tpu.memory_space<vmem>>, %arg2: memref<8x136xbf16, #tpu.memory_space<vmem>>, %arg3: memref<32x232xbf16, #tpu.memory_space<vmem>>, %arg4: memref<32x232xbf16, #tpu.memory_space<vmem>>, %arg5: memref<32x130xbf16, #tpu.memory_space<vmem>>, %arg6: memref<32x96xbf16, #tpu.memory_space<vmem>>, %arg7: memref<2x96xf32, #tpu.memory_space<vmem>>, %arg8: memref<32x1xbf16, #tpu.memory_space<vmem>>, %arg9: memref<1x1xf32, #tpu.memory_space<vmem>>, %arg10: memref<16x1xf32, #tpu.memory_space<vmem>>) attributes {dimension_semantics = [], scalar_prefetch = 0 : i64, scratch_operands = 0 : i64, tpu.core_type = #tpu.core_type<tc>} {
    %c0 = arith.constant 0 : index
    %c0_0 = arith.constant 0 : index
    %0 = vector.load %arg0[%c0, %c0_0] : memref<16x16xf32, #tpu.memory_space<vmem>>, vector<16x16xf32>
    %c0_1 = arith.constant 0 : index
    %c0_2 = arith.constant 0 : index
    %1 = vector.load %arg6[%c0_1, %c0_2] : memref<32x96xbf16, #tpu.memory_space<vmem>>, vector<32x96xbf16>
    %c0_3 = arith.constant 0 : index
    %c0_4 = arith.constant 0 : index
    %2 = vector.load %arg7[%c0_3, %c0_4] : memref<2x96xf32, #tpu.memory_space<vmem>>, vector<2x96xf32>
    %3 = vector.extract_strided_slice %2 {offsets = [0, 0], sizes = [1, 96], strides = [1, 1]} : vector<2x96xf32> to vector<1x96xf32>
    %4 = vector.extract_strided_slice %2 {offsets = [1, 0], sizes = [1, 96], strides = [1, 1]} : vector<2x96xf32> to vector<1x96xf32>
    %c0_5 = arith.constant 0 : index
    %c0_6 = arith.constant 0 : index
    %5 = vector.load %arg1[%c0_5, %c0_6] : memref<16x8xf32, #tpu.memory_space<vmem>>, vector<16x8xf32>
    %6 = arith.truncf %5 : vector<16x8xf32> to vector<16x8xbf16>
    %c0_7 = arith.constant 0 : index
    %c0_8 = arith.constant 0 : index
    %7 = vector.load %arg2[%c0_7, %c0_8] : memref<8x136xbf16, #tpu.memory_space<vmem>>, vector<8x136xbf16>
    %cst = arith.constant dense<0.000000e+00> : vector<16x136xf32>
    %8 = tpu.matmul %6, %7, %cst {dimension_numbers = #tpu.dot_dimension_numbers<[1], [0], [0], [1], [0, 0, 1, 1], [], []>} : vector<16x8xbf16>, vector<8x136xbf16>, vector<16x136xf32> -> vector<16x136xf32>
    %9 = vector.extract_strided_slice %8 {offsets = [0, 0], sizes = [16, 128], strides = [1, 1]} : vector<16x136xf32> to vector<16x128xf32>
    %10 = vector.extract_strided_slice %8 {offsets = [0, 128], sizes = [16, 4], strides = [1, 1]} : vector<16x136xf32> to vector<16x4xf32>
    %11 = vector.extract_strided_slice %8 {offsets = [0, 132], sizes = [16, 4], strides = [1, 1]} : vector<16x136xf32> to vector<16x4xf32>
    %12 = tpu.transpose %10, [1, 0] : vector<16x4xf32> -> vector<4x16xf32>
    %13 = vector.extract_strided_slice %11 {offsets = [0, 0], sizes = [16, 1], strides = [1, 1]} : vector<16x4xf32> to vector<16x1xf32>
    %14 = vector.extract_strided_slice %12 {offsets = [0, 0], sizes = [1, 16], strides = [1, 1]} : vector<4x16xf32> to vector<1x16xf32>
    %15 = vector.broadcast %13 : vector<16x1xf32> to vector<16x16xf32>
    %16 = vector.broadcast %14 : vector<1x16xf32> to vector<16x16xf32>
    %17 = arith.addf %15, %16 : vector<16x16xf32>
    %cst_9 = arith.constant 0.000000e+00 : f32
    %18 = vector.broadcast %cst_9 : f32 to vector<16x16xf32>
    %19 = arith.cmpf ogt, %17, %18 : vector<16x16xf32>
    %cst_10 = arith.constant 0.00999999977 : f32
    %20 = vector.broadcast %cst_10 : f32 to vector<16x16xf32>
    %21 = arith.mulf %20, %17 : vector<16x16xf32>
    %22 = arith.select %19, %17, %21 : vector<16x16xi1>, vector<16x16xf32>
    %23 = arith.addf %22, %0 : vector<16x16xf32>
    %cst_11 = arith.constant dense<0xFF800000> : vector<16xf32>
    %24 = vector.multi_reduction <maximumf>, %23, %cst_11 [1] : vector<16x16xf32> to vector<16xf32>
    %25 = vector.shape_cast %24 : vector<16xf32> to vector<16x1xf32>
    %26 = vector.broadcast %25 : vector<16x1xf32> to vector<16x16xf32>
    %27 = arith.subf %23, %26 : vector<16x16xf32>
    %28 = math.exp %27 : vector<16x16xf32>
    %cst_12 = arith.constant dense<0.000000e+00> : vector<16xf32>
    %29 = vector.multi_reduction <add>, %28, %cst_12 [1] : vector<16x16xf32> to vector<16xf32>
    %30 = vector.shape_cast %29 : vector<16xf32> to vector<16x1xf32>
    %31 = tpu.reciprocal %30 {approx = true} : vector<16x1xf32> -> vector<16x1xf32>
    %32 = vector.broadcast %31 : vector<16x1xf32> to vector<16x16xf32>
    %33 = arith.mulf %28, %32 : vector<16x16xf32>
    %34 = vector.extract_strided_slice %9 {offsets = [0, 0], sizes = [16, 32], strides = [1, 1]} : vector<16x128xf32> to vector<16x32xf32>
    %35 = arith.truncf %33 : vector<16x16xf32> to vector<16x16xbf16>
    %36 = arith.truncf %34 : vector<16x32xf32> to vector<16x32xbf16>
    %cst_13 = arith.constant dense<0.000000e+00> : vector<16x32xf32>
    %37 = tpu.matmul %35, %36, %cst_13 {dimension_numbers = #tpu.dot_dimension_numbers<[1], [0], [0], [1], [0, 0, 1, 1], [], []>} : vector<16x16xbf16>, vector<16x32xbf16>, vector<16x32xf32> -> vector<16x32xf32>
    %38 = vector.extract_strided_slice %11 {offsets = [0, 1], sizes = [16, 1], strides = [1, 1]} : vector<16x4xf32> to vector<16x1xf32>
    %39 = vector.extract_strided_slice %12 {offsets = [1, 0], sizes = [1, 16], strides = [1, 1]} : vector<4x16xf32> to vector<1x16xf32>
    %40 = vector.broadcast %38 : vector<16x1xf32> to vector<16x16xf32>
    %41 = vector.broadcast %39 : vector<1x16xf32> to vector<16x16xf32>
    %42 = arith.addf %40, %41 : vector<16x16xf32>
    %cst_14 = arith.constant 0.000000e+00 : f32
    %43 = vector.broadcast %cst_14 : f32 to vector<16x16xf32>
    %44 = arith.cmpf ogt, %42, %43 : vector<16x16xf32>
    %cst_15 = arith.constant 0.00999999977 : f32
    %45 = vector.broadcast %cst_15 : f32 to vector<16x16xf32>
    %46 = arith.mulf %45, %42 : vector<16x16xf32>
    %47 = arith.select %44, %42, %46 : vector<16x16xi1>, vector<16x16xf32>
    %48 = arith.addf %47, %0 : vector<16x16xf32>
    %cst_16 = arith.constant dense<0xFF800000> : vector<16xf32>
    %49 = vector.multi_reduction <maximumf>, %48, %cst_16 [1] : vector<16x16xf32> to vector<16xf32>
    %50 = vector.shape_cast %49 : vector<16xf32> to vector<16x1xf32>
    %51 = vector.broadcast %50 : vector<16x1xf32> to vector<16x16xf32>
    %52 = arith.subf %48, %51 : vector<16x16xf32>
    %53 = math.exp %52 : vector<16x16xf32>
    %cst_17 = arith.constant dense<0.000000e+00> : vector<16xf32>
    %54 = vector.multi_reduction <add>, %53, %cst_17 [1] : vector<16x16xf32> to vector<16xf32>
    %55 = vector.shape_cast %54 : vector<16xf32> to vector<16x1xf32>
    %56 = tpu.reciprocal %55 {approx = true} : vector<16x1xf32> -> vector<16x1xf32>
    %57 = vector.broadcast %56 : vector<16x1xf32> to vector<16x16xf32>
    %58 = arith.mulf %53, %57 : vector<16x16xf32>
    %59 = vector.extract_strided_slice %9 {offsets = [0, 32], sizes = [16, 32], strides = [1, 1]} : vector<16x128xf32> to vector<16x32xf32>
    %60 = arith.truncf %58 : vector<16x16xf32> to vector<16x16xbf16>
    %61 = arith.truncf %59 : vector<16x32xf32> to vector<16x32xbf16>
    %cst_18 = arith.constant dense<0.000000e+00> : vector<16x32xf32>
    %62 = tpu.matmul %60, %61, %cst_18 {dimension_numbers = #tpu.dot_dimension_numbers<[1], [0], [0], [1], [0, 0, 1, 1], [], []>} : vector<16x16xbf16>, vector<16x32xbf16>, vector<16x32xf32> -> vector<16x32xf32>
    %63 = arith.addf %37, %62 : vector<16x32xf32>
    %64 = vector.extract_strided_slice %11 {offsets = [0, 2], sizes = [16, 1], strides = [1, 1]} : vector<16x4xf32> to vector<16x1xf32>
    %65 = vector.extract_strided_slice %12 {offsets = [2, 0], sizes = [1, 16], strides = [1, 1]} : vector<4x16xf32> to vector<1x16xf32>
    %66 = vector.broadcast %64 : vector<16x1xf32> to vector<16x16xf32>
    %67 = vector.broadcast %65 : vector<1x16xf32> to vector<16x16xf32>
    %68 = arith.addf %66, %67 : vector<16x16xf32>
    %cst_19 = arith.constant 0.000000e+00 : f32
    %69 = vector.broadcast %cst_19 : f32 to vector<16x16xf32>
    %70 = arith.cmpf ogt, %68, %69 : vector<16x16xf32>
    %cst_20 = arith.constant 0.00999999977 : f32
    %71 = vector.broadcast %cst_20 : f32 to vector<16x16xf32>
    %72 = arith.mulf %71, %68 : vector<16x16xf32>
    %73 = arith.select %70, %68, %72 : vector<16x16xi1>, vector<16x16xf32>
    %74 = arith.addf %73, %0 : vector<16x16xf32>
    %cst_21 = arith.constant dense<0xFF800000> : vector<16xf32>
    %75 = vector.multi_reduction <maximumf>, %74, %cst_21 [1] : vector<16x16xf32> to vector<16xf32>
    %76 = vector.shape_cast %75 : vector<16xf32> to vector<16x1xf32>
    %77 = vector.broadcast %76 : vector<16x1xf32> to vector<16x16xf32>
    %78 = arith.subf %74, %77 : vector<16x16xf32>
    %79 = math.exp %78 : vector<16x16xf32>
    %cst_22 = arith.constant dense<0.000000e+00> : vector<16xf32>
    %80 = vector.multi_reduction <add>, %79, %cst_22 [1] : vector<16x16xf32> to vector<16xf32>
    %81 = vector.shape_cast %80 : vector<16xf32> to vector<16x1xf32>
    %82 = tpu.reciprocal %81 {approx = true} : vector<16x1xf32> -> vector<16x1xf32>
    %83 = vector.broadcast %82 : vector<16x1xf32> to vector<16x16xf32>
    %84 = arith.mulf %79, %83 : vector<16x16xf32>
    %85 = vector.extract_strided_slice %9 {offsets = [0, 64], sizes = [16, 32], strides = [1, 1]} : vector<16x128xf32> to vector<16x32xf32>
    %86 = arith.truncf %84 : vector<16x16xf32> to vector<16x16xbf16>
    %87 = arith.truncf %85 : vector<16x32xf32> to vector<16x32xbf16>
    %cst_23 = arith.constant dense<0.000000e+00> : vector<16x32xf32>
    %88 = tpu.matmul %86, %87, %cst_23 {dimension_numbers = #tpu.dot_dimension_numbers<[1], [0], [0], [1], [0, 0, 1, 1], [], []>} : vector<16x16xbf16>, vector<16x32xbf16>, vector<16x32xf32> -> vector<16x32xf32>
    %89 = arith.addf %63, %88 : vector<16x32xf32>
    %90 = vector.extract_strided_slice %11 {offsets = [0, 3], sizes = [16, 1], strides = [1, 1]} : vector<16x4xf32> to vector<16x1xf32>
    %91 = vector.extract_strided_slice %12 {offsets = [3, 0], sizes = [1, 16], strides = [1, 1]} : vector<4x16xf32> to vector<1x16xf32>
    %92 = vector.broadcast %90 : vector<16x1xf32> to vector<16x16xf32>
    %93 = vector.broadcast %91 : vector<1x16xf32> to vector<16x16xf32>
    %94 = arith.addf %92, %93 : vector<16x16xf32>
    %cst_24 = arith.constant 0.000000e+00 : f32
    %95 = vector.broadcast %cst_24 : f32 to vector<16x16xf32>
    %96 = arith.cmpf ogt, %94, %95 : vector<16x16xf32>
    %cst_25 = arith.constant 0.00999999977 : f32
    %97 = vector.broadcast %cst_25 : f32 to vector<16x16xf32>
    %98 = arith.mulf %97, %94 : vector<16x16xf32>
    %99 = arith.select %96, %94, %98 : vector<16x16xi1>, vector<16x16xf32>
    %100 = arith.addf %99, %0 : vector<16x16xf32>
    %cst_26 = arith.constant dense<0xFF800000> : vector<16xf32>
    %101 = vector.multi_reduction <maximumf>, %100, %cst_26 [1] : vector<16x16xf32> to vector<16xf32>
    %102 = vector.shape_cast %101 : vector<16xf32> to vector<16x1xf32>
    %103 = vector.broadcast %102 : vector<16x1xf32> to vector<16x16xf32>
    %104 = arith.subf %100, %103 : vector<16x16xf32>
    %105 = math.exp %104 : vector<16x16xf32>
    %cst_27 = arith.constant dense<0.000000e+00> : vector<16xf32>
    %106 = vector.multi_reduction <add>, %105, %cst_27 [1] : vector<16x16xf32> to vector<16xf32>
    %107 = vector.shape_cast %106 : vector<16xf32> to vector<16x1xf32>
    %108 = tpu.reciprocal %107 {approx = true} : vector<16x1xf32> -> vector<16x1xf32>
    %109 = vector.broadcast %108 : vector<16x1xf32> to vector<16x16xf32>
    %110 = arith.mulf %105, %109 : vector<16x16xf32>
    %111 = vector.extract_strided_slice %9 {offsets = [0, 96], sizes = [16, 32], strides = [1, 1]} : vector<16x128xf32> to vector<16x32xf32>
    %112 = arith.truncf %110 : vector<16x16xf32> to vector<16x16xbf16>
    %113 = arith.truncf %111 : vector<16x32xf32> to vector<16x32xbf16>
    %cst_28 = arith.constant dense<0.000000e+00> : vector<16x32xf32>
    %114 = tpu.matmul %112, %113, %cst_28 {dimension_numbers = #tpu.dot_dimension_numbers<[1], [0], [0], [1], [0, 0, 1, 1], [], []>} : vector<16x16xbf16>, vector<16x32xbf16>, vector<16x32xf32> -> vector<16x32xf32>
    %115 = arith.addf %89, %114 : vector<16x32xf32>
    %cst_29 = arith.constant 2.500000e-01 : f32
    %116 = vector.broadcast %cst_29 : f32 to vector<16x32xf32>
    %117 = arith.mulf %115, %116 : vector<16x32xf32>
    %118 = arith.truncf %117 : vector<16x32xf32> to vector<16x32xbf16>
    %c0_30 = arith.constant 0 : index
    %c0_31 = arith.constant 0 : index
    %119 = vector.load %arg3[%c0_30, %c0_31] : memref<32x232xbf16, #tpu.memory_space<vmem>>, vector<32x232xbf16>
    %cst_32 = arith.constant dense<0.000000e+00> : vector<16x232xf32>
    %120 = tpu.matmul %118, %119, %cst_32 {dimension_numbers = #tpu.dot_dimension_numbers<[1], [0], [0], [1], [0, 0, 1, 1], [], []>} : vector<16x32xbf16>, vector<32x232xbf16>, vector<16x232xf32> -> vector<16x232xf32>
    %121 = vector.extract_strided_slice %120 {offsets = [0, 0], sizes = [16, 128], strides = [1, 1]} : vector<16x232xf32> to vector<16x128xf32>
    %122 = vector.extract_strided_slice %120 {offsets = [0, 128], sizes = [16, 4], strides = [1, 1]} : vector<16x232xf32> to vector<16x4xf32>
    %123 = vector.extract_strided_slice %120 {offsets = [0, 132], sizes = [16, 4], strides = [1, 1]} : vector<16x232xf32> to vector<16x4xf32>
    %124 = tpu.transpose %122, [1, 0] : vector<16x4xf32> -> vector<4x16xf32>
    %125 = vector.extract_strided_slice %123 {offsets = [0, 0], sizes = [16, 1], strides = [1, 1]} : vector<16x4xf32> to vector<16x1xf32>
    %126 = vector.extract_strided_slice %124 {offsets = [0, 0], sizes = [1, 16], strides = [1, 1]} : vector<4x16xf32> to vector<1x16xf32>
    %127 = vector.broadcast %125 : vector<16x1xf32> to vector<16x16xf32>
    %128 = vector.broadcast %126 : vector<1x16xf32> to vector<16x16xf32>
    %129 = arith.addf %127, %128 : vector<16x16xf32>
    %cst_33 = arith.constant 0.000000e+00 : f32
    %130 = vector.broadcast %cst_33 : f32 to vector<16x16xf32>
    %131 = arith.cmpf ogt, %129, %130 : vector<16x16xf32>
    %cst_34 = arith.constant 0.00999999977 : f32
    %132 = vector.broadcast %cst_34 : f32 to vector<16x16xf32>
    %133 = arith.mulf %132, %129 : vector<16x16xf32>
    %134 = arith.select %131, %129, %133 : vector<16x16xi1>, vector<16x16xf32>
    %135 = arith.addf %134, %0 : vector<16x16xf32>
    %cst_35 = arith.constant dense<0xFF800000> : vector<16xf32>
    %136 = vector.multi_reduction <maximumf>, %135, %cst_35 [1] : vector<16x16xf32> to vector<16xf32>
    %137 = vector.shape_cast %136 : vector<16xf32> to vector<16x1xf32>
    %138 = vector.broadcast %137 : vector<16x1xf32> to vector<16x16xf32>
    %139 = arith.subf %135, %138 : vector<16x16xf32>
    %140 = math.exp %139 : vector<16x16xf32>
    %cst_36 = arith.constant dense<0.000000e+00> : vector<16xf32>
    %141 = vector.multi_reduction <add>, %140, %cst_36 [1] : vector<16x16xf32> to vector<16xf32>
    %142 = vector.shape_cast %141 : vector<16xf32> to vector<16x1xf32>
    %143 = tpu.reciprocal %142 {approx = true} : vector<16x1xf32> -> vector<16x1xf32>
    %144 = vector.broadcast %143 : vector<16x1xf32> to vector<16x16xf32>
    %145 = arith.mulf %140, %144 : vector<16x16xf32>
    %146 = vector.extract_strided_slice %121 {offsets = [0, 0], sizes = [16, 32], strides = [1, 1]} : vector<16x128xf32> to vector<16x32xf32>
    %147 = arith.truncf %145 : vector<16x16xf32> to vector<16x16xbf16>
    %148 = arith.truncf %146 : vector<16x32xf32> to vector<16x32xbf16>
    %cst_37 = arith.constant dense<0.000000e+00> : vector<16x32xf32>
    %149 = tpu.matmul %147, %148, %cst_37 {dimension_numbers = #tpu.dot_dimension_numbers<[1], [0], [0], [1], [0, 0, 1, 1], [], []>} : vector<16x16xbf16>, vector<16x32xbf16>, vector<16x32xf32> -> vector<16x32xf32>
    %150 = vector.extract_strided_slice %123 {offsets = [0, 1], sizes = [16, 1], strides = [1, 1]} : vector<16x4xf32> to vector<16x1xf32>
    %151 = vector.extract_strided_slice %124 {offsets = [1, 0], sizes = [1, 16], strides = [1, 1]} : vector<4x16xf32> to vector<1x16xf32>
    %152 = vector.broadcast %150 : vector<16x1xf32> to vector<16x16xf32>
    %153 = vector.broadcast %151 : vector<1x16xf32> to vector<16x16xf32>
    %154 = arith.addf %152, %153 : vector<16x16xf32>
    %cst_38 = arith.constant 0.000000e+00 : f32
    %155 = vector.broadcast %cst_38 : f32 to vector<16x16xf32>
    %156 = arith.cmpf ogt, %154, %155 : vector<16x16xf32>
    %cst_39 = arith.constant 0.00999999977 : f32
    %157 = vector.broadcast %cst_39 : f32 to vector<16x16xf32>
    %158 = arith.mulf %157, %154 : vector<16x16xf32>
    %159 = arith.select %156, %154, %158 : vector<16x16xi1>, vector<16x16xf32>
    %160 = arith.addf %159, %0 : vector<16x16xf32>
    %cst_40 = arith.constant dense<0xFF800000> : vector<16xf32>
    %161 = vector.multi_reduction <maximumf>, %160, %cst_40 [1] : vector<16x16xf32> to vector<16xf32>
    %162 = vector.shape_cast %161 : vector<16xf32> to vector<16x1xf32>
    %163 = vector.broadcast %162 : vector<16x1xf32> to vector<16x16xf32>
    %164 = arith.subf %160, %163 : vector<16x16xf32>
    %165 = math.exp %164 : vector<16x16xf32>
    %cst_41 = arith.constant dense<0.000000e+00> : vector<16xf32>
    %166 = vector.multi_reduction <add>, %165, %cst_41 [1] : vector<16x16xf32> to vector<16xf32>
    %167 = vector.shape_cast %166 : vector<16xf32> to vector<16x1xf32>
    %168 = tpu.reciprocal %167 {approx = true} : vector<16x1xf32> -> vector<16x1xf32>
    %169 = vector.broadcast %168 : vector<16x1xf32> to vector<16x16xf32>
    %170 = arith.mulf %165, %169 : vector<16x16xf32>
    %171 = vector.extract_strided_slice %121 {offsets = [0, 32], sizes = [16, 32], strides = [1, 1]} : vector<16x128xf32> to vector<16x32xf32>
    %172 = arith.truncf %170 : vector<16x16xf32> to vector<16x16xbf16>
    %173 = arith.truncf %171 : vector<16x32xf32> to vector<16x32xbf16>
    %cst_42 = arith.constant dense<0.000000e+00> : vector<16x32xf32>
    %174 = tpu.matmul %172, %173, %cst_42 {dimension_numbers = #tpu.dot_dimension_numbers<[1], [0], [0], [1], [0, 0, 1, 1], [], []>} : vector<16x16xbf16>, vector<16x32xbf16>, vector<16x32xf32> -> vector<16x32xf32>
    %175 = arith.addf %149, %174 : vector<16x32xf32>
    %176 = vector.extract_strided_slice %123 {offsets = [0, 2], sizes = [16, 1], strides = [1, 1]} : vector<16x4xf32> to vector<16x1xf32>
    %177 = vector.extract_strided_slice %124 {offsets = [2, 0], sizes = [1, 16], strides = [1, 1]} : vector<4x16xf32> to vector<1x16xf32>
    %178 = vector.broadcast %176 : vector<16x1xf32> to vector<16x16xf32>
    %179 = vector.broadcast %177 : vector<1x16xf32> to vector<16x16xf32>
    %180 = arith.addf %178, %179 : vector<16x16xf32>
    %cst_43 = arith.constant 0.000000e+00 : f32
    %181 = vector.broadcast %cst_43 : f32 to vector<16x16xf32>
    %182 = arith.cmpf ogt, %180, %181 : vector<16x16xf32>
    %cst_44 = arith.constant 0.00999999977 : f32
    %183 = vector.broadcast %cst_44 : f32 to vector<16x16xf32>
    %184 = arith.mulf %183, %180 : vector<16x16xf32>
    %185 = arith.select %182, %180, %184 : vector<16x16xi1>, vector<16x16xf32>
    %186 = arith.addf %185, %0 : vector<16x16xf32>
    %cst_45 = arith.constant dense<0xFF800000> : vector<16xf32>
    %187 = vector.multi_reduction <maximumf>, %186, %cst_45 [1] : vector<16x16xf32> to vector<16xf32>
    %188 = vector.shape_cast %187 : vector<16xf32> to vector<16x1xf32>
    %189 = vector.broadcast %188 : vector<16x1xf32> to vector<16x16xf32>
    %190 = arith.subf %186, %189 : vector<16x16xf32>
    %191 = math.exp %190 : vector<16x16xf32>
    %cst_46 = arith.constant dense<0.000000e+00> : vector<16xf32>
    %192 = vector.multi_reduction <add>, %191, %cst_46 [1] : vector<16x16xf32> to vector<16xf32>
    %193 = vector.shape_cast %192 : vector<16xf32> to vector<16x1xf32>
    %194 = tpu.reciprocal %193 {approx = true} : vector<16x1xf32> -> vector<16x1xf32>
    %195 = vector.broadcast %194 : vector<16x1xf32> to vector<16x16xf32>
    %196 = arith.mulf %191, %195 : vector<16x16xf32>
    %197 = vector.extract_strided_slice %121 {offsets = [0, 64], sizes = [16, 32], strides = [1, 1]} : vector<16x128xf32> to vector<16x32xf32>
    %198 = arith.truncf %196 : vector<16x16xf32> to vector<16x16xbf16>
    %199 = arith.truncf %197 : vector<16x32xf32> to vector<16x32xbf16>
    %cst_47 = arith.constant dense<0.000000e+00> : vector<16x32xf32>
    %200 = tpu.matmul %198, %199, %cst_47 {dimension_numbers = #tpu.dot_dimension_numbers<[1], [0], [0], [1], [0, 0, 1, 1], [], []>} : vector<16x16xbf16>, vector<16x32xbf16>, vector<16x32xf32> -> vector<16x32xf32>
    %201 = arith.addf %175, %200 : vector<16x32xf32>
    %202 = vector.extract_strided_slice %123 {offsets = [0, 3], sizes = [16, 1], strides = [1, 1]} : vector<16x4xf32> to vector<16x1xf32>
    %203 = vector.extract_strided_slice %124 {offsets = [3, 0], sizes = [1, 16], strides = [1, 1]} : vector<4x16xf32> to vector<1x16xf32>
    %204 = vector.broadcast %202 : vector<16x1xf32> to vector<16x16xf32>
    %205 = vector.broadcast %203 : vector<1x16xf32> to vector<16x16xf32>
    %206 = arith.addf %204, %205 : vector<16x16xf32>
    %cst_48 = arith.constant 0.000000e+00 : f32
    %207 = vector.broadcast %cst_48 : f32 to vector<16x16xf32>
    %208 = arith.cmpf ogt, %206, %207 : vector<16x16xf32>
    %cst_49 = arith.constant 0.00999999977 : f32
    %209 = vector.broadcast %cst_49 : f32 to vector<16x16xf32>
    %210 = arith.mulf %209, %206 : vector<16x16xf32>
    %211 = arith.select %208, %206, %210 : vector<16x16xi1>, vector<16x16xf32>
    %212 = arith.addf %211, %0 : vector<16x16xf32>
    %cst_50 = arith.constant dense<0xFF800000> : vector<16xf32>
    %213 = vector.multi_reduction <maximumf>, %212, %cst_50 [1] : vector<16x16xf32> to vector<16xf32>
    %214 = vector.shape_cast %213 : vector<16xf32> to vector<16x1xf32>
    %215 = vector.broadcast %214 : vector<16x1xf32> to vector<16x16xf32>
    %216 = arith.subf %212, %215 : vector<16x16xf32>
    %217 = math.exp %216 : vector<16x16xf32>
    %cst_51 = arith.constant dense<0.000000e+00> : vector<16xf32>
    %218 = vector.multi_reduction <add>, %217, %cst_51 [1] : vector<16x16xf32> to vector<16xf32>
    %219 = vector.shape_cast %218 : vector<16xf32> to vector<16x1xf32>
    %220 = tpu.reciprocal %219 {approx = true} : vector<16x1xf32> -> vector<16x1xf32>
    %221 = vector.broadcast %220 : vector<16x1xf32> to vector<16x16xf32>
    %222 = arith.mulf %217, %221 : vector<16x16xf32>
    %223 = vector.extract_strided_slice %121 {offsets = [0, 96], sizes = [16, 32], strides = [1, 1]} : vector<16x128xf32> to vector<16x32xf32>
    %224 = arith.truncf %222 : vector<16x16xf32> to vector<16x16xbf16>
    %225 = arith.truncf %223 : vector<16x32xf32> to vector<16x32xbf16>
    %cst_52 = arith.constant dense<0.000000e+00> : vector<16x32xf32>
    %226 = tpu.matmul %224, %225, %cst_52 {dimension_numbers = #tpu.dot_dimension_numbers<[1], [0], [0], [1], [0, 0, 1, 1], [], []>} : vector<16x16xbf16>, vector<16x32xbf16>, vector<16x32xf32> -> vector<16x32xf32>
    %227 = arith.addf %201, %226 : vector<16x32xf32>
    %cst_53 = arith.constant 2.500000e-01 : f32
    %228 = vector.broadcast %cst_53 : f32 to vector<16x32xf32>
    %229 = arith.mulf %227, %228 : vector<16x32xf32>
    %230 = vector.extract_strided_slice %120 {offsets = [0, 136], sizes = [16, 96], strides = [1, 1]} : vector<16x232xf32> to vector<16x96xf32>
    %231 = vector.broadcast %4 : vector<1x96xf32> to vector<16x96xf32>
    %232 = arith.addf %230, %231 : vector<16x96xf32>
    %233 = arith.truncf %229 : vector<16x32xf32> to vector<16x32xbf16>
    %cst_54 = arith.constant dense<0.000000e+00> : vector<16x96xf32>
    %234 = tpu.matmul %233, %1, %cst_54 {dimension_numbers = #tpu.dot_dimension_numbers<[1], [0], [0], [1], [0, 0, 1, 1], [], []>} : vector<16x32xbf16>, vector<32x96xbf16>, vector<16x96xf32> -> vector<16x96xf32>
    %235 = vector.broadcast %3 : vector<1x96xf32> to vector<16x96xf32>
    %236 = arith.addf %234, %235 : vector<16x96xf32>
    %237 = vector.extract_strided_slice %236 {offsets = [0, 0], sizes = [16, 32], strides = [1, 1]} : vector<16x96xf32> to vector<16x32xf32>
    %238 = vector.extract_strided_slice %232 {offsets = [0, 0], sizes = [16, 32], strides = [1, 1]} : vector<16x96xf32> to vector<16x32xf32>
    %239 = arith.addf %237, %238 : vector<16x32xf32>
    %240 = arith.negf %239 : vector<16x32xf32>
    %241 = math.exp %240 : vector<16x32xf32>
    %cst_55 = arith.constant 1.000000e+00 : f32
    %242 = vector.broadcast %cst_55 : f32 to vector<16x32xf32>
    %243 = arith.addf %242, %241 : vector<16x32xf32>
    %244 = arith.divf %242, %243 : vector<16x32xf32>
    %245 = vector.extract_strided_slice %236 {offsets = [0, 32], sizes = [16, 32], strides = [1, 1]} : vector<16x96xf32> to vector<16x32xf32>
    %246 = vector.extract_strided_slice %232 {offsets = [0, 32], sizes = [16, 32], strides = [1, 1]} : vector<16x96xf32> to vector<16x32xf32>
    %247 = arith.addf %245, %246 : vector<16x32xf32>
    %248 = arith.negf %247 : vector<16x32xf32>
    %249 = math.exp %248 : vector<16x32xf32>
    %cst_56 = arith.constant 1.000000e+00 : f32
    %250 = vector.broadcast %cst_56 : f32 to vector<16x32xf32>
    %251 = arith.addf %250, %249 : vector<16x32xf32>
    %252 = arith.divf %250, %251 : vector<16x32xf32>
    %253 = vector.extract_strided_slice %236 {offsets = [0, 64], sizes = [16, 32], strides = [1, 1]} : vector<16x96xf32> to vector<16x32xf32>
    %254 = vector.extract_strided_slice %232 {offsets = [0, 64], sizes = [16, 32], strides = [1, 1]} : vector<16x96xf32> to vector<16x32xf32>
    %255 = arith.mulf %244, %254 : vector<16x32xf32>
    %256 = arith.addf %253, %255 : vector<16x32xf32>
    %257 = math.tanh %256 : vector<16x32xf32>
    %cst_57 = arith.constant 1.000000e+00 : f32
    %258 = vector.broadcast %cst_57 : f32 to vector<16x32xf32>
    %259 = arith.subf %258, %252 : vector<16x32xf32>
    %260 = arith.mulf %259, %257 : vector<16x32xf32>
    %261 = arith.mulf %252, %117 : vector<16x32xf32>
    %262 = arith.addf %260, %261 : vector<16x32xf32>
    %263 = arith.truncf %262 : vector<16x32xf32> to vector<16x32xbf16>
    %c0_58 = arith.constant 0 : index
    %c0_59 = arith.constant 0 : index
    %264 = vector.load %arg4[%c0_58, %c0_59] : memref<32x232xbf16, #tpu.memory_space<vmem>>, vector<32x232xbf16>
    %cst_60 = arith.constant dense<0.000000e+00> : vector<16x232xf32>
    %265 = tpu.matmul %263, %264, %cst_60 {dimension_numbers = #tpu.dot_dimension_numbers<[1], [0], [0], [1], [0, 0, 1, 1], [], []>} : vector<16x32xbf16>, vector<32x232xbf16>, vector<16x232xf32> -> vector<16x232xf32>
    %266 = vector.extract_strided_slice %265 {offsets = [0, 0], sizes = [16, 128], strides = [1, 1]} : vector<16x232xf32> to vector<16x128xf32>
    %267 = vector.extract_strided_slice %265 {offsets = [0, 128], sizes = [16, 4], strides = [1, 1]} : vector<16x232xf32> to vector<16x4xf32>
    %268 = vector.extract_strided_slice %265 {offsets = [0, 132], sizes = [16, 4], strides = [1, 1]} : vector<16x232xf32> to vector<16x4xf32>
    %269 = tpu.transpose %267, [1, 0] : vector<16x4xf32> -> vector<4x16xf32>
    %270 = vector.extract_strided_slice %268 {offsets = [0, 0], sizes = [16, 1], strides = [1, 1]} : vector<16x4xf32> to vector<16x1xf32>
    %271 = vector.extract_strided_slice %269 {offsets = [0, 0], sizes = [1, 16], strides = [1, 1]} : vector<4x16xf32> to vector<1x16xf32>
    %272 = vector.broadcast %270 : vector<16x1xf32> to vector<16x16xf32>
    %273 = vector.broadcast %271 : vector<1x16xf32> to vector<16x16xf32>
    %274 = arith.addf %272, %273 : vector<16x16xf32>
    %cst_61 = arith.constant 0.000000e+00 : f32
    %275 = vector.broadcast %cst_61 : f32 to vector<16x16xf32>
    %276 = arith.cmpf ogt, %274, %275 : vector<16x16xf32>
    %cst_62 = arith.constant 0.00999999977 : f32
    %277 = vector.broadcast %cst_62 : f32 to vector<16x16xf32>
    %278 = arith.mulf %277, %274 : vector<16x16xf32>
    %279 = arith.select %276, %274, %278 : vector<16x16xi1>, vector<16x16xf32>
    %280 = arith.addf %279, %0 : vector<16x16xf32>
    %cst_63 = arith.constant dense<0xFF800000> : vector<16xf32>
    %281 = vector.multi_reduction <maximumf>, %280, %cst_63 [1] : vector<16x16xf32> to vector<16xf32>
    %282 = vector.shape_cast %281 : vector<16xf32> to vector<16x1xf32>
    %283 = vector.broadcast %282 : vector<16x1xf32> to vector<16x16xf32>
    %284 = arith.subf %280, %283 : vector<16x16xf32>
    %285 = math.exp %284 : vector<16x16xf32>
    %cst_64 = arith.constant dense<0.000000e+00> : vector<16xf32>
    %286 = vector.multi_reduction <add>, %285, %cst_64 [1] : vector<16x16xf32> to vector<16xf32>
    %287 = vector.shape_cast %286 : vector<16xf32> to vector<16x1xf32>
    %288 = tpu.reciprocal %287 {approx = true} : vector<16x1xf32> -> vector<16x1xf32>
    %289 = vector.broadcast %288 : vector<16x1xf32> to vector<16x16xf32>
    %290 = arith.mulf %285, %289 : vector<16x16xf32>
    %291 = vector.extract_strided_slice %266 {offsets = [0, 0], sizes = [16, 32], strides = [1, 1]} : vector<16x128xf32> to vector<16x32xf32>
    %292 = arith.truncf %290 : vector<16x16xf32> to vector<16x16xbf16>
    %293 = arith.truncf %291 : vector<16x32xf32> to vector<16x32xbf16>
    %cst_65 = arith.constant dense<0.000000e+00> : vector<16x32xf32>
    %294 = tpu.matmul %292, %293, %cst_65 {dimension_numbers = #tpu.dot_dimension_numbers<[1], [0], [0], [1], [0, 0, 1, 1], [], []>} : vector<16x16xbf16>, vector<16x32xbf16>, vector<16x32xf32> -> vector<16x32xf32>
    %295 = vector.extract_strided_slice %268 {offsets = [0, 1], sizes = [16, 1], strides = [1, 1]} : vector<16x4xf32> to vector<16x1xf32>
    %296 = vector.extract_strided_slice %269 {offsets = [1, 0], sizes = [1, 16], strides = [1, 1]} : vector<4x16xf32> to vector<1x16xf32>
    %297 = vector.broadcast %295 : vector<16x1xf32> to vector<16x16xf32>
    %298 = vector.broadcast %296 : vector<1x16xf32> to vector<16x16xf32>
    %299 = arith.addf %297, %298 : vector<16x16xf32>
    %cst_66 = arith.constant 0.000000e+00 : f32
    %300 = vector.broadcast %cst_66 : f32 to vector<16x16xf32>
    %301 = arith.cmpf ogt, %299, %300 : vector<16x16xf32>
    %cst_67 = arith.constant 0.00999999977 : f32
    %302 = vector.broadcast %cst_67 : f32 to vector<16x16xf32>
    %303 = arith.mulf %302, %299 : vector<16x16xf32>
    %304 = arith.select %301, %299, %303 : vector<16x16xi1>, vector<16x16xf32>
    %305 = arith.addf %304, %0 : vector<16x16xf32>
    %cst_68 = arith.constant dense<0xFF800000> : vector<16xf32>
    %306 = vector.multi_reduction <maximumf>, %305, %cst_68 [1] : vector<16x16xf32> to vector<16xf32>
    %307 = vector.shape_cast %306 : vector<16xf32> to vector<16x1xf32>
    %308 = vector.broadcast %307 : vector<16x1xf32> to vector<16x16xf32>
    %309 = arith.subf %305, %308 : vector<16x16xf32>
    %310 = math.exp %309 : vector<16x16xf32>
    %cst_69 = arith.constant dense<0.000000e+00> : vector<16xf32>
    %311 = vector.multi_reduction <add>, %310, %cst_69 [1] : vector<16x16xf32> to vector<16xf32>
    %312 = vector.shape_cast %311 : vector<16xf32> to vector<16x1xf32>
    %313 = tpu.reciprocal %312 {approx = true} : vector<16x1xf32> -> vector<16x1xf32>
    %314 = vector.broadcast %313 : vector<16x1xf32> to vector<16x16xf32>
    %315 = arith.mulf %310, %314 : vector<16x16xf32>
    %316 = vector.extract_strided_slice %266 {offsets = [0, 32], sizes = [16, 32], strides = [1, 1]} : vector<16x128xf32> to vector<16x32xf32>
    %317 = arith.truncf %315 : vector<16x16xf32> to vector<16x16xbf16>
    %318 = arith.truncf %316 : vector<16x32xf32> to vector<16x32xbf16>
    %cst_70 = arith.constant dense<0.000000e+00> : vector<16x32xf32>
    %319 = tpu.matmul %317, %318, %cst_70 {dimension_numbers = #tpu.dot_dimension_numbers<[1], [0], [0], [1], [0, 0, 1, 1], [], []>} : vector<16x16xbf16>, vector<16x32xbf16>, vector<16x32xf32> -> vector<16x32xf32>
    %320 = arith.addf %294, %319 : vector<16x32xf32>
    %321 = vector.extract_strided_slice %268 {offsets = [0, 2], sizes = [16, 1], strides = [1, 1]} : vector<16x4xf32> to vector<16x1xf32>
    %322 = vector.extract_strided_slice %269 {offsets = [2, 0], sizes = [1, 16], strides = [1, 1]} : vector<4x16xf32> to vector<1x16xf32>
    %323 = vector.broadcast %321 : vector<16x1xf32> to vector<16x16xf32>
    %324 = vector.broadcast %322 : vector<1x16xf32> to vector<16x16xf32>
    %325 = arith.addf %323, %324 : vector<16x16xf32>
    %cst_71 = arith.constant 0.000000e+00 : f32
    %326 = vector.broadcast %cst_71 : f32 to vector<16x16xf32>
    %327 = arith.cmpf ogt, %325, %326 : vector<16x16xf32>
    %cst_72 = arith.constant 0.00999999977 : f32
    %328 = vector.broadcast %cst_72 : f32 to vector<16x16xf32>
    %329 = arith.mulf %328, %325 : vector<16x16xf32>
    %330 = arith.select %327, %325, %329 : vector<16x16xi1>, vector<16x16xf32>
    %331 = arith.addf %330, %0 : vector<16x16xf32>
    %cst_73 = arith.constant dense<0xFF800000> : vector<16xf32>
    %332 = vector.multi_reduction <maximumf>, %331, %cst_73 [1] : vector<16x16xf32> to vector<16xf32>
    %333 = vector.shape_cast %332 : vector<16xf32> to vector<16x1xf32>
    %334 = vector.broadcast %333 : vector<16x1xf32> to vector<16x16xf32>
    %335 = arith.subf %331, %334 : vector<16x16xf32>
    %336 = math.exp %335 : vector<16x16xf32>
    %cst_74 = arith.constant dense<0.000000e+00> : vector<16xf32>
    %337 = vector.multi_reduction <add>, %336, %cst_74 [1] : vector<16x16xf32> to vector<16xf32>
    %338 = vector.shape_cast %337 : vector<16xf32> to vector<16x1xf32>
    %339 = tpu.reciprocal %338 {approx = true} : vector<16x1xf32> -> vector<16x1xf32>
    %340 = vector.broadcast %339 : vector<16x1xf32> to vector<16x16xf32>
    %341 = arith.mulf %336, %340 : vector<16x16xf32>
    %342 = vector.extract_strided_slice %266 {offsets = [0, 64], sizes = [16, 32], strides = [1, 1]} : vector<16x128xf32> to vector<16x32xf32>
    %343 = arith.truncf %341 : vector<16x16xf32> to vector<16x16xbf16>
    %344 = arith.truncf %342 : vector<16x32xf32> to vector<16x32xbf16>
    %cst_75 = arith.constant dense<0.000000e+00> : vector<16x32xf32>
    %345 = tpu.matmul %343, %344, %cst_75 {dimension_numbers = #tpu.dot_dimension_numbers<[1], [0], [0], [1], [0, 0, 1, 1], [], []>} : vector<16x16xbf16>, vector<16x32xbf16>, vector<16x32xf32> -> vector<16x32xf32>
    %346 = arith.addf %320, %345 : vector<16x32xf32>
    %347 = vector.extract_strided_slice %268 {offsets = [0, 3], sizes = [16, 1], strides = [1, 1]} : vector<16x4xf32> to vector<16x1xf32>
    %348 = vector.extract_strided_slice %269 {offsets = [3, 0], sizes = [1, 16], strides = [1, 1]} : vector<4x16xf32> to vector<1x16xf32>
    %349 = vector.broadcast %347 : vector<16x1xf32> to vector<16x16xf32>
    %350 = vector.broadcast %348 : vector<1x16xf32> to vector<16x16xf32>
    %351 = arith.addf %349, %350 : vector<16x16xf32>
    %cst_76 = arith.constant 0.000000e+00 : f32
    %352 = vector.broadcast %cst_76 : f32 to vector<16x16xf32>
    %353 = arith.cmpf ogt, %351, %352 : vector<16x16xf32>
    %cst_77 = arith.constant 0.00999999977 : f32
    %354 = vector.broadcast %cst_77 : f32 to vector<16x16xf32>
    %355 = arith.mulf %354, %351 : vector<16x16xf32>
    %356 = arith.select %353, %351, %355 : vector<16x16xi1>, vector<16x16xf32>
    %357 = arith.addf %356, %0 : vector<16x16xf32>
    %cst_78 = arith.constant dense<0xFF800000> : vector<16xf32>
    %358 = vector.multi_reduction <maximumf>, %357, %cst_78 [1] : vector<16x16xf32> to vector<16xf32>
    %359 = vector.shape_cast %358 : vector<16xf32> to vector<16x1xf32>
    %360 = vector.broadcast %359 : vector<16x1xf32> to vector<16x16xf32>
    %361 = arith.subf %357, %360 : vector<16x16xf32>
    %362 = math.exp %361 : vector<16x16xf32>
    %cst_79 = arith.constant dense<0.000000e+00> : vector<16xf32>
    %363 = vector.multi_reduction <add>, %362, %cst_79 [1] : vector<16x16xf32> to vector<16xf32>
    %364 = vector.shape_cast %363 : vector<16xf32> to vector<16x1xf32>
    %365 = tpu.reciprocal %364 {approx = true} : vector<16x1xf32> -> vector<16x1xf32>
    %366 = vector.broadcast %365 : vector<16x1xf32> to vector<16x16xf32>
    %367 = arith.mulf %362, %366 : vector<16x16xf32>
    %368 = vector.extract_strided_slice %266 {offsets = [0, 96], sizes = [16, 32], strides = [1, 1]} : vector<16x128xf32> to vector<16x32xf32>
    %369 = arith.truncf %367 : vector<16x16xf32> to vector<16x16xbf16>
    %370 = arith.truncf %368 : vector<16x32xf32> to vector<16x32xbf16>
    %cst_80 = arith.constant dense<0.000000e+00> : vector<16x32xf32>
    %371 = tpu.matmul %369, %370, %cst_80 {dimension_numbers = #tpu.dot_dimension_numbers<[1], [0], [0], [1], [0, 0, 1, 1], [], []>} : vector<16x16xbf16>, vector<16x32xbf16>, vector<16x32xf32> -> vector<16x32xf32>
    %372 = arith.addf %346, %371 : vector<16x32xf32>
    %cst_81 = arith.constant 2.500000e-01 : f32
    %373 = vector.broadcast %cst_81 : f32 to vector<16x32xf32>
    %374 = arith.mulf %372, %373 : vector<16x32xf32>
    %375 = vector.extract_strided_slice %265 {offsets = [0, 136], sizes = [16, 96], strides = [1, 1]} : vector<16x232xf32> to vector<16x96xf32>
    %376 = vector.broadcast %4 : vector<1x96xf32> to vector<16x96xf32>
    %377 = arith.addf %375, %376 : vector<16x96xf32>
    %378 = arith.truncf %374 : vector<16x32xf32> to vector<16x32xbf16>
    %cst_82 = arith.constant dense<0.000000e+00> : vector<16x96xf32>
    %379 = tpu.matmul %378, %1, %cst_82 {dimension_numbers = #tpu.dot_dimension_numbers<[1], [0], [0], [1], [0, 0, 1, 1], [], []>} : vector<16x32xbf16>, vector<32x96xbf16>, vector<16x96xf32> -> vector<16x96xf32>
    %380 = vector.broadcast %3 : vector<1x96xf32> to vector<16x96xf32>
    %381 = arith.addf %379, %380 : vector<16x96xf32>
    %382 = vector.extract_strided_slice %381 {offsets = [0, 0], sizes = [16, 32], strides = [1, 1]} : vector<16x96xf32> to vector<16x32xf32>
    %383 = vector.extract_strided_slice %377 {offsets = [0, 0], sizes = [16, 32], strides = [1, 1]} : vector<16x96xf32> to vector<16x32xf32>
    %384 = arith.addf %382, %383 : vector<16x32xf32>
    %385 = arith.negf %384 : vector<16x32xf32>
    %386 = math.exp %385 : vector<16x32xf32>
    %cst_83 = arith.constant 1.000000e+00 : f32
    %387 = vector.broadcast %cst_83 : f32 to vector<16x32xf32>
    %388 = arith.addf %387, %386 : vector<16x32xf32>
    %389 = arith.divf %387, %388 : vector<16x32xf32>
    %390 = vector.extract_strided_slice %381 {offsets = [0, 32], sizes = [16, 32], strides = [1, 1]} : vector<16x96xf32> to vector<16x32xf32>
    %391 = vector.extract_strided_slice %377 {offsets = [0, 32], sizes = [16, 32], strides = [1, 1]} : vector<16x96xf32> to vector<16x32xf32>
    %392 = arith.addf %390, %391 : vector<16x32xf32>
    %393 = arith.negf %392 : vector<16x32xf32>
    %394 = math.exp %393 : vector<16x32xf32>
    %cst_84 = arith.constant 1.000000e+00 : f32
    %395 = vector.broadcast %cst_84 : f32 to vector<16x32xf32>
    %396 = arith.addf %395, %394 : vector<16x32xf32>
    %397 = arith.divf %395, %396 : vector<16x32xf32>
    %398 = vector.extract_strided_slice %381 {offsets = [0, 64], sizes = [16, 32], strides = [1, 1]} : vector<16x96xf32> to vector<16x32xf32>
    %399 = vector.extract_strided_slice %377 {offsets = [0, 64], sizes = [16, 32], strides = [1, 1]} : vector<16x96xf32> to vector<16x32xf32>
    %400 = arith.mulf %389, %399 : vector<16x32xf32>
    %401 = arith.addf %398, %400 : vector<16x32xf32>
    %402 = math.tanh %401 : vector<16x32xf32>
    %cst_85 = arith.constant 1.000000e+00 : f32
    %403 = vector.broadcast %cst_85 : f32 to vector<16x32xf32>
    %404 = arith.subf %403, %397 : vector<16x32xf32>
    %405 = arith.mulf %404, %402 : vector<16x32xf32>
    %406 = arith.mulf %397, %262 : vector<16x32xf32>
    %407 = arith.addf %405, %406 : vector<16x32xf32>
    %408 = arith.truncf %407 : vector<16x32xf32> to vector<16x32xbf16>
    %c0_86 = arith.constant 0 : index
    %c0_87 = arith.constant 0 : index
    %409 = vector.load %arg5[%c0_86, %c0_87] : memref<32x130xbf16, #tpu.memory_space<vmem>>, vector<32x130xbf16>
    %cst_88 = arith.constant dense<0.000000e+00> : vector<16x130xf32>
    %410 = tpu.matmul %408, %409, %cst_88 {dimension_numbers = #tpu.dot_dimension_numbers<[1], [0], [0], [1], [0, 0, 1, 1], [], []>} : vector<16x32xbf16>, vector<32x130xbf16>, vector<16x130xf32> -> vector<16x130xf32>
    %411 = vector.extract_strided_slice %410 {offsets = [0, 0], sizes = [16, 32], strides = [1, 1]} : vector<16x130xf32> to vector<16x32xf32>
    %412 = vector.extract_strided_slice %410 {offsets = [0, 32], sizes = [16, 1], strides = [1, 1]} : vector<16x130xf32> to vector<16x1xf32>
    %413 = vector.extract_strided_slice %410 {offsets = [0, 33], sizes = [16, 1], strides = [1, 1]} : vector<16x130xf32> to vector<16x1xf32>
    %414 = tpu.transpose %412, [1, 0] : vector<16x1xf32> -> vector<1x16xf32>
    %415 = vector.broadcast %413 : vector<16x1xf32> to vector<16x16xf32>
    %416 = vector.broadcast %414 : vector<1x16xf32> to vector<16x16xf32>
    %417 = arith.addf %415, %416 : vector<16x16xf32>
    %cst_89 = arith.constant 0.000000e+00 : f32
    %418 = vector.broadcast %cst_89 : f32 to vector<16x16xf32>
    %419 = arith.cmpf ogt, %417, %418 : vector<16x16xf32>
    %cst_90 = arith.constant 0.00999999977 : f32
    %420 = vector.broadcast %cst_90 : f32 to vector<16x16xf32>
    %421 = arith.mulf %420, %417 : vector<16x16xf32>
    %422 = arith.select %419, %417, %421 : vector<16x16xi1>, vector<16x16xf32>
    %423 = arith.addf %422, %0 : vector<16x16xf32>
    %cst_91 = arith.constant dense<0xFF800000> : vector<16xf32>
    %424 = vector.multi_reduction <maximumf>, %423, %cst_91 [1] : vector<16x16xf32> to vector<16xf32>
    %425 = vector.shape_cast %424 : vector<16xf32> to vector<16x1xf32>
    %426 = vector.broadcast %425 : vector<16x1xf32> to vector<16x16xf32>
    %427 = arith.subf %423, %426 : vector<16x16xf32>
    %428 = math.exp %427 : vector<16x16xf32>
    %cst_92 = arith.constant dense<0.000000e+00> : vector<16xf32>
    %429 = vector.multi_reduction <add>, %428, %cst_92 [1] : vector<16x16xf32> to vector<16xf32>
    %430 = vector.shape_cast %429 : vector<16xf32> to vector<16x1xf32>
    %431 = tpu.reciprocal %430 {approx = true} : vector<16x1xf32> -> vector<16x1xf32>
    %432 = vector.broadcast %431 : vector<16x1xf32> to vector<16x16xf32>
    %433 = arith.mulf %428, %432 : vector<16x16xf32>
    %434 = arith.truncf %433 : vector<16x16xf32> to vector<16x16xbf16>
    %435 = arith.truncf %411 : vector<16x32xf32> to vector<16x32xbf16>
    %cst_93 = arith.constant dense<0.000000e+00> : vector<16x32xf32>
    %436 = tpu.matmul %434, %435, %cst_93 {dimension_numbers = #tpu.dot_dimension_numbers<[1], [0], [0], [1], [0, 0, 1, 1], [], []>} : vector<16x16xbf16>, vector<16x32xbf16>, vector<16x32xf32> -> vector<16x32xf32>
    %cst_94 = arith.constant 1.000000e+00 : f32
    %437 = vector.broadcast %cst_94 : f32 to vector<16x32xf32>
    %438 = arith.mulf %436, %437 : vector<16x32xf32>
    %439 = vector.extract_strided_slice %410 {offsets = [0, 34], sizes = [16, 96], strides = [1, 1]} : vector<16x130xf32> to vector<16x96xf32>
    %440 = vector.broadcast %4 : vector<1x96xf32> to vector<16x96xf32>
    %441 = arith.addf %439, %440 : vector<16x96xf32>
    %442 = arith.truncf %438 : vector<16x32xf32> to vector<16x32xbf16>
    %cst_95 = arith.constant dense<0.000000e+00> : vector<16x96xf32>
    %443 = tpu.matmul %442, %1, %cst_95 {dimension_numbers = #tpu.dot_dimension_numbers<[1], [0], [0], [1], [0, 0, 1, 1], [], []>} : vector<16x32xbf16>, vector<32x96xbf16>, vector<16x96xf32> -> vector<16x96xf32>
    %444 = vector.broadcast %3 : vector<1x96xf32> to vector<16x96xf32>
    %445 = arith.addf %443, %444 : vector<16x96xf32>
    %446 = vector.extract_strided_slice %445 {offsets = [0, 0], sizes = [16, 32], strides = [1, 1]} : vector<16x96xf32> to vector<16x32xf32>
    %447 = vector.extract_strided_slice %441 {offsets = [0, 0], sizes = [16, 32], strides = [1, 1]} : vector<16x96xf32> to vector<16x32xf32>
    %448 = arith.addf %446, %447 : vector<16x32xf32>
    %449 = arith.negf %448 : vector<16x32xf32>
    %450 = math.exp %449 : vector<16x32xf32>
    %cst_96 = arith.constant 1.000000e+00 : f32
    %451 = vector.broadcast %cst_96 : f32 to vector<16x32xf32>
    %452 = arith.addf %451, %450 : vector<16x32xf32>
    %453 = arith.divf %451, %452 : vector<16x32xf32>
    %454 = vector.extract_strided_slice %445 {offsets = [0, 32], sizes = [16, 32], strides = [1, 1]} : vector<16x96xf32> to vector<16x32xf32>
    %455 = vector.extract_strided_slice %441 {offsets = [0, 32], sizes = [16, 32], strides = [1, 1]} : vector<16x96xf32> to vector<16x32xf32>
    %456 = arith.addf %454, %455 : vector<16x32xf32>
    %457 = arith.negf %456 : vector<16x32xf32>
    %458 = math.exp %457 : vector<16x32xf32>
    %cst_97 = arith.constant 1.000000e+00 : f32
    %459 = vector.broadcast %cst_97 : f32 to vector<16x32xf32>
    %460 = arith.addf %459, %458 : vector<16x32xf32>
    %461 = arith.divf %459, %460 : vector<16x32xf32>
    %462 = vector.extract_strided_slice %445 {offsets = [0, 64], sizes = [16, 32], strides = [1, 1]} : vector<16x96xf32> to vector<16x32xf32>
    %463 = vector.extract_strided_slice %441 {offsets = [0, 64], sizes = [16, 32], strides = [1, 1]} : vector<16x96xf32> to vector<16x32xf32>
    %464 = arith.mulf %453, %463 : vector<16x32xf32>
    %465 = arith.addf %462, %464 : vector<16x32xf32>
    %466 = math.tanh %465 : vector<16x32xf32>
    %cst_98 = arith.constant 1.000000e+00 : f32
    %467 = vector.broadcast %cst_98 : f32 to vector<16x32xf32>
    %468 = arith.subf %467, %461 : vector<16x32xf32>
    %469 = arith.mulf %468, %466 : vector<16x32xf32>
    %470 = arith.mulf %461, %407 : vector<16x32xf32>
    %471 = arith.addf %469, %470 : vector<16x32xf32>
    %472 = arith.truncf %471 : vector<16x32xf32> to vector<16x32xbf16>
    %c0_99 = arith.constant 0 : index
    %c0_100 = arith.constant 0 : index
    %473 = vector.load %arg8[%c0_99, %c0_100] : memref<32x1xbf16, #tpu.memory_space<vmem>>, vector<32x1xbf16>
    %cst_101 = arith.constant dense<0.000000e+00> : vector<16x1xf32>
    %474 = tpu.matmul %472, %473, %cst_101 {dimension_numbers = #tpu.dot_dimension_numbers<[1], [0], [0], [1], [0, 0, 1, 1], [], []>} : vector<16x32xbf16>, vector<32x1xbf16>, vector<16x1xf32> -> vector<16x1xf32>
    %c0_102 = arith.constant 0 : index
    %c0_103 = arith.constant 0 : index
    %475 = vector.load %arg9[%c0_102, %c0_103] : memref<1x1xf32, #tpu.memory_space<vmem>>, vector<1x1xf32>
    %476 = vector.broadcast %475 : vector<1x1xf32> to vector<16x1xf32>
    %477 = arith.addf %474, %476 : vector<16x1xf32>
    %478 = arith.negf %477 : vector<16x1xf32>
    %479 = math.exp %478 : vector<16x1xf32>
    %cst_104 = arith.constant 1.000000e+00 : f32
    %480 = vector.broadcast %cst_104 : f32 to vector<16x1xf32>
    %481 = arith.addf %480, %479 : vector<16x1xf32>
    %482 = arith.divf %480, %481 : vector<16x1xf32>
    %c0_105 = arith.constant 0 : index
    %c0_106 = arith.constant 0 : index
    %483 = vector.load %arg10[%c0_105, %c0_106] : memref<16x1xf32, #tpu.memory_space<vmem>>, vector<16x1xf32>
    tpu.vector_store %arg10[%c0_105, %c0_106], %482 {strides = array<i32>} : memref<16x1xf32, #tpu.memory_space<vmem>>, vector<16x1xf32>,
    return
  }
}

</mosaic_0001>

<llo_original>
// kernel: tpu_custom_call.1
$region0: #{tpu_custom_call.1}
  #allocation0 [shape = 'u32[]', space=smem, size = 0x4, offset = 0x4, fixed_abs, tag = 'smem constant byte address 0x4 - core index']
  #allocation1 [shape = 'u32[144,128]{1,0:T(1,128)}', space=vmem, size = 0x12000, scoped, tag = 'internal scratch']
  #allocation2 [shape = 'f32[1,1]{1,0:T(1,128)S(1)}', space=vmem, size = 0x200, scoped, tag = 'scoped memory for tpu_custom_call.1']
  %s0 = inlined_call_operand.vmem [shape: f32[16,16], index: 0, kind: input, shape index: {}]
  %s1 = inlined_call_operand.vmem [shape: f32[16,8], index: 1, kind: input, shape index: {}]
  %s2 = inlined_call_operand.hbm [shape: bf16[8,136], index: 2, kind: input, shape index: {}]
  %s3 = inlined_call_operand.vmem [shape: bf16[32,232], index: 3, kind: input, shape index: {}]
  %s4 = inlined_call_operand.hbm [shape: bf16[32,232], index: 4, kind: input, shape index: {}]
  %s5 = inlined_call_operand.hbm [shape: bf16[32,130], index: 5, kind: input, shape index: {}]
  %s6 = inlined_call_operand.hbm [shape: bf16[32,96], index: 6, kind: input, shape index: {}]
  %s7 = inlined_call_operand.vmem [shape: f32[2,96], index: 7, kind: input, shape index: {}]
  %s8 = inlined_call_operand.vmem [shape: bf16[32,1], index: 8, kind: input, shape index: {}]
  %s9 = inlined_call_operand.<no memory space> [shape: f32[1,1], index: 9, kind: input, shape index: {}]
  %s10 = inlined_call_operand.vmem [shape: f32[16,1], index: 10, kind: output, shape index: {}]
  %s11 = sld [smem:[#allocation0]]
  $region66: #{tpu_custom_call.1} parent=0
    _
  %s13 = ssub.s32 1, %s11
  %s14 = scalar_select 0, %s13, %s11
  %v15 = vstv %s9
  %16 = vst [vmem:[#allocation2] sm:$0x1] %v15
  $region1: #{tpu_custom_call.1} parent=0
    #allocation3 [shape = 'u8[4096]{0}', space=vmem, size = 0x1000, scoped, tag = 'input window, operand 2, single buffered']
    #allocation4 [shape = 's32[1]{0}', space=sflag, size = 0x4, scoped, tag = 'scoped memory for tpu_custom_call.1']
    #allocation5 [shape = 'u8[16384]{0}', space=vmem, size = 0x4000, scoped, tag = 'input window, operand 4, single buffered']
    #allocation6 [shape = 's32[1]{0}', space=sflag, size = 0x4, scoped, tag = 'scoped memory for tpu_custom_call.1']
    #allocation7 [shape = 'u8[16384]{0}', space=vmem, size = 0x4000, scoped, tag = 'input window, operand 5, single buffered']
    #allocation8 [shape = 'u8[8192]{0}', space=vmem, size = 0x2000, scoped, tag = 'input window, operand 6, single buffered']
    #allocation9 [shape = 's32[1]{0}', space=sflag, size = 0x4, scoped, tag = 'scoped memory for tpu_custom_call.1']
    %17 = vsyncpa [#allocation4], 0
    %18 = vsyncpa [#allocation6], 0
    %19 = vsyncpa [#allocation9], 0
    // Predicated region
    $region2: #{tpu_custom_call.1} parent=1 // pred_check
      _
    $region3: #{tpu_custom_call.1} parent=1 // pred_check_branch
      %21 = sbr.rel (0) target = $region5
    $region4: #{tpu_custom_call.1} parent=1 // pred_region
      _
    $region5: #{tpu_custom_call.1} parent=1 // pred_fallthru
      _
    // Predicated region
    $region6: #{tpu_custom_call.1} parent=1 // pred_check
      _
    $region7: #{tpu_custom_call.1} parent=1 // pred_check_branch
      %23 = sbr.rel (0) target = $region9
    $region8: #{tpu_custom_call.1} parent=1 // pred_region
      _
    $region9: #{tpu_custom_call.1} parent=1 // pred_fallthru
      _
    // Predicated region
    $region10: #{tpu_custom_call.1} parent=1 // pred_check
      _
    $region11: #{tpu_custom_call.1} parent=1 // pred_check_branch
      %25 = sbr.rel (0) target = $region13
    $region12: #{tpu_custom_call.1} parent=1 // pred_region
      %s27 = ssub.s32 128, 128
      %28 = vsyncadd [#allocation4], %s27
      %s30 = sshll.u32 [#allocation3], 4
      %s31 = int_to_ptr.vmem [resolvable:$true] %s30
      %33 = dma.hbm_to_vmem [thread:$0]  %s2, 128, %s31, [#allocation4]
    $region13: #{tpu_custom_call.1} parent=1 // pred_fallthru
      _
    // Predicated region
    $region14: #{tpu_custom_call.1} parent=1 // pred_check
      _
    $region15: #{tpu_custom_call.1} parent=1 // pred_check_branch
      %35 = sbr.rel (0) target = $region17
    $region16: #{tpu_custom_call.1} parent=1 // pred_region
      _
    $region17: #{tpu_custom_call.1} parent=1 // pred_fallthru
      _
    // Predicated region
    $region18: #{tpu_custom_call.1} parent=1 // pred_check
      _
    $region19: #{tpu_custom_call.1} parent=1 // pred_check_branch
      %37 = sbr.rel (0) target = $region21
    $region20: #{tpu_custom_call.1} parent=1 // pred_region
      %s39 = ssub.s32 512, 512
      %40 = vsyncadd [#allocation6], %s39
      %s41 = sshll.u32 [#allocation5], 4
      %s42 = int_to_ptr.vmem [resolvable:$true] %s41
      %47 = dma.hbm_to_vmem [thread:$0]  %s4, 512, %s42, [#allocation6], 128, 128, 8
    $region21: #{tpu_custom_call.1} parent=1 // pred_fallthru
      _
    // Predicated region
    $region22: #{tpu_custom_call.1} parent=1 // pred_check
      _
    $region23: #{tpu_custom_call.1} parent=1 // pred_check_branch
      %49 = sbr.rel (0) target = $region25
    $region24: #{tpu_custom_call.1} parent=1 // pred_region
      %s51 = ssub.s32 512, 512
      %52 = vsyncadd [#allocation6], %s51
      %s53 = sshll.u32 [#allocation7], 4
      %s54 = int_to_ptr.vmem [resolvable:$true] %s53
      %59 = dma.hbm_to_vmem [thread:$0]  %s5, 512, %s54, [#allocation6], 128, 128, 8
    $region25: #{tpu_custom_call.1} parent=1 // pred_fallthru
      _
    // Predicated region
    $region26: #{tpu_custom_call.1} parent=1 // pred_check
      _
    $region27: #{tpu_custom_call.1} parent=1 // pred_check_branch
      %61 = sbr.rel (0) target = $region29
    $region28: #{tpu_custom_call.1} parent=1 // pred_region
      %s63 = ssub.s32 256, 256
      %64 = vsyncadd [#allocation9], %s63
      %s65 = sshll.u32 [#allocation8], 4
      %s66 = int_to_ptr.vmem [resolvable:$true] %s65
      %71 = dma.hbm_to_vmem [thread:$0]  %s6, 256, %s66, [#allocation9], 64, 64, 4
    $region29: #{tpu_custom_call.1} parent=1 // pred_fallthru
      _
    // Predicated region
    $region30: #{tpu_custom_call.1} parent=1 // pred_check
      _
    $region31: #{tpu_custom_call.1} parent=1 // pred_check_branch
      %73 = sbr.rel (0) target = $region33
    $region32: #{tpu_custom_call.1} parent=1 // pred_region
      _
    $region33: #{tpu_custom_call.1} parent=1 // pred_fallthru
      _
    // Predicated region
    $region34: #{tpu_custom_call.1} parent=1 // pred_check
      _
    $region35: #{tpu_custom_call.1} parent=1 // pred_check_branch
      %75 = sbr.rel (0) target = $region37
    $region36: #{tpu_custom_call.1} parent=1 // pred_region
      _
    $region37: #{tpu_custom_call.1} parent=1 // pred_fallthru
      _
    // Predicated region
    $region38: #{tpu_custom_call.1} parent=1 // pred_check
      _
    $region39: #{tpu_custom_call.1} parent=1 // pred_check_branch
      %77 = sbr.rel (0) target = $region41
    $region40: #{tpu_custom_call.1} parent=1 // pred_region
      _
    $region41: #{tpu_custom_call.1} parent=1 // pred_fallthru
      _
    // Predicated region
    $region42: #{tpu_custom_call.1} parent=1 // pred_check
      _
    $region43: #{tpu_custom_call.1} parent=1 // pred_check_branch
      %79 = sbr.rel (0) target = $region45
    $region44: #{tpu_custom_call.1} parent=1 // pred_region
      %80 = dma.done [#allocation4], 128
    $region45: #{tpu_custom_call.1} parent=1 // pred_fallthru
      _
    // Predicated region
    $region46: #{tpu_custom_call.1} parent=1 // pred_check
      _
    $region47: #{tpu_custom_call.1} parent=1 // pred_check_branch
      %82 = sbr.rel (0) target = $region49
    $region48: #{tpu_custom_call.1} parent=1 // pred_region
      %83 = dma.done [#allocation6], 512
    $region49: #{tpu_custom_call.1} parent=1 // pred_fallthru
      _
    // Predicated region
    $region50: #{tpu_custom_call.1} parent=1 // pred_check
      _
    $region51: #{tpu_custom_call.1} parent=1 // pred_check_branch
      %85 = sbr.rel (0) target = $region53
    $region52: #{tpu_custom_call.1} parent=1 // pred_region
      %86 = dma.done [#allocation6], 512
    $region53: #{tpu_custom_call.1} parent=1 // pred_fallthru
      _
    // Predicated region
    $region54: #{tpu_custom_call.1} parent=1 // pred_check
      _
    $region55: #{tpu_custom_call.1} parent=1 // pred_check_branch
      %88 = sbr.rel (0) target = $region57
    $region56: #{tpu_custom_call.1} parent=1 // pred_region
      %89 = dma.done [#allocation9], 256
    $region57: #{tpu_custom_call.1} parent=1 // pred_fallthru
      _
    %v91 = vld [vmem:[%s0] sm:$0xff]
    %v92 = vld [vmem:[%s0 + $0x8] sm:$0xff]
    %v93 = vld [vmem:[#allocation8] sm:$0xf]
    %v94 = vld [vmem:[#allocation8 + $0x4] sm:$0xf]
    %v95 = vld [vmem:[#allocation8 + $0x8] sm:$0xf]
    %v96 = vld [vmem:[#allocation8 + $0xc] sm:$0xf]
    %v97 = vld [vmem:[%s7] sm:$0x3]
    %v98 = vld [vmem:[%s1] sm:$0xff]
    %v99 = vld [vmem:[%s1 + $0x8] sm:$0xff]
    %v100 = vpack.c.bf16 %v99, %v98
    %v101 = vld [vmem:[#allocation3] sm:$0xff]
    %v103 = vunpack.c.l.b16 %v101
    %v104 = vunpack.c.h.b16 %v101
    %v105 = vpack.c.b16 %v103, %v103
    %v106 = vpack.c.b16 %v104, %v104
    %vm107 = vcmask 64512
    %v109 = vsel %vm107, %v100, 0
    %vm111 = vcmask 1043456
    %v113 = vsel %vm111, %v105, 0
    %v116 = vsel %vm111, %v106, 0
    %118 = vmatprep.subr.bf16.mxu0 0
    %119 = vmatpush1.bf16.msra.mxu0 0
    %120 = vmatprep.subr.bf16.mxu0 0
    %121 = vmatpush1.bf16.msra.mxu0 0
    %122 = vmatprep.subr.bf16.mxu0 0
    %123 = vmatpush1.bf16.msra.mxu0 0
    %124 = vmatprep.subr.bf16.mxu0 0
    %125 = vmatpush1.bf16.msra.mxu0 0
    %126 = vmatprep.subr.bf16.mxu0 0
    %127 = vmatpush1.bf16.msra.mxu0 0
    %128 = vmatprep.subr.bf16.mxu0 0
    %129 = vmatpush1.bf16.msra.mxu0 0
    %130 = vmatprep.subr.bf16.mxu0 0
    %131 = vmatpush1.bf16.msra.mxu0 0
    %132 = vmatprep.subr.bf16.mxu0 %v116
    %133 = vmatpush1.bf16.msra.mxu0 %v113
    %134 = vmatprep.subr.bf16.mxu0 0
    %135 = vmatpush2.bf16.msra.mxu0 0
    %136 = vmatprep.subr.bf16.mxu0 0
    %137 = vmatpush2.bf16.msra.mxu0 0
    %138 = vmatprep.subr.bf16.mxu0 0
    %139 = vmatpush2.bf16.msra.mxu0 0
    %140 = vmatprep.subr.bf16.mxu0 0
    %141 = vmatpush2.bf16.msra.mxu0 0
    %142 = vmatprep.subr.bf16.mxu0 0
    %143 = vmatpush2.bf16.msra.mxu0 0
    %144 = vmatprep.subr.bf16.mxu0 0
    %145 = vmatpush2.bf16.msra.mxu0 0
    %146 = vmatprep.subr.bf16.mxu0 0
    %147 = vmatpush2.bf16.msra.mxu0 0
    %148 = vmatprep.subr.bf16.mxu0 0
    %149 = vmatpush2.bf16.msra.mxu0 0
    %150 = vmatprep.mubr.bf16.mxu0 0
    %151 = vmatmul.mubr.bf16.gmra.mxu0 %v109
    %v152 = vpop.f32.mrf.mxu0
    %v153 = vadd.f32 0.0, %v152
    %v154 = vpop.f32.mrf.mxu0
    %v155 = vadd.f32 0.0, %v154
    %v156 = vpop.f32.mrf.mxu0
    %v157 = vadd.f32 0.0, %v156
    %v158 = vpop.f32.mrf.mxu0
    %v159 = vadd.f32 0.0, %v158
    %160 = vdwg.mxu0
    %161 = vxpose.xlu0.b32.start [1/16] %v155, 128
    %162 = vxpose.xlu0.b32.cont [2/16] %v159, 128
    %163 = vxpose.xlu0.b32.cont [3/16] 0.0, 128
    %164 = vxpose.xlu0.b32.cont [4/16] 0.0, 128
    %165 = vxpose.xlu0.b32.cont [5/16] 0.0, 128
    %166 = vxpose.xlu0.b32.cont [6/16] 0.0, 128
    %167 = vxpose.xlu0.b32.cont [7/16] 0.0, 128
    %168 = vxpose.xlu0.b32.cont [8/16] 0.0, 128
    %169 = vxpose.xlu0.b32.cont [9/16] 0.0, 128
    %170 = vxpose.xlu0.b32.cont [10/16] 0.0, 128
    %171 = vxpose.xlu0.b32.cont [11/16] 0.0, 128
    %172 = vxpose.xlu0.b32.cont [12/16] 0.0, 128
    %173 = vxpose.xlu0.b32.cont [13/16] 0.0, 128
    %174 = vxpose.xlu0.b32.cont [14/16] 0.0, 128
    %175 = vxpose.xlu0.b32.cont [15/16] 0.0, 128
    %176 = vxpose.xlu0.b32.end [16/16] 0.0, 128
    %v177 = vpop.trf.xlu0
    %v178 = vpop.trf.xlu0
    %v179 = vpop.trf.xlu0
    %v180 = vpop.trf.xlu0
    %v181 = vpop.trf.xlu0
    %v182 = vpop.trf.xlu0
    %v183 = vpop.trf.xlu0
    %v184 = vpop.trf.xlu0
    %v185 = vpop.trf.xlu0
    %v186 = vpop.trf.xlu0
    %v187 = vpop.trf.xlu0
    %v188 = vpop.trf.xlu0
    %v189 = vpop.trf.xlu0
    %v190 = vpop.trf.xlu0
    %v191 = vpop.trf.xlu0
    %v192 = vpop.trf.xlu0
    %194 = vset.pattern.permute.xlu0 4
    %195 = vperm.xlu0 %194, %v155
    %v196 = vpop.permute.xlu0 %195
    %199 = vset.pattern.permute.xlu0 4
    %200 = vperm.xlu0 %199, %v159
    %v201 = vpop.permute.xlu0 %200
    %v203 = vlaneseq
    %v204 = vshrl.u32 %v203, 7
    %v205 = vsub.s32 0, %v204
    %v206 = vrot.slane %v177, %v205
    %v207 = vadd.f32 %v196, %v206
    %v208 = vadd.f32 %v201, %v206
    %vm209 = vcmp.gt.f32.partialorder %v207, 0.0
    %vm210 = vcmp.gt.f32.partialorder %v208, 0.0
    %v211 = vmul.f32 %v207, 0.01
    %v212 = vmul.f32 %v208, 0.01
    %v213 = vsel %vm209, %v207, %v211
    %v214 = vsel %vm210, %v208, %v212
    %v215 = vadd.f32 %v213, %v91
    %v216 = vadd.f32 %v214, %v92
    %vm217 = vcmask 130048
    %v218 = vsel %vm217, %v215, -inf
    %219 = vmax.xlane.f32.xlu0 %v218
    %v220 = vpop.xlane.xlu0 %219
    %v221 = vsel %vm217, %v216, -inf
    %222 = vmax.xlane.f32.xlu0 %v221
    %v223 = vpop.xlane.xlu0 %222
    %v224 = vsub.f32 %v215, %v220
    %v225 = vsub.f32 %v216, %v223
    %v226 = vmul.f32 %v224, 1.442695
    %v227 = vpow.pop %v226
    %v228 = vmul.f32 %v225, 1.442695
    %v229 = vpow.pop %v228
    %v230 = vsel %vm217, %v227, 0.0
    %231 = vadd.xlane.f32.xlu0 %v230
    %v232 = vpop.xlane.xlu0 %231
    %v233 = vsel %vm217, %v229, 0.0
    %234 = vadd.xlane.f32.xlu0 %v233
    %v235 = vpop.xlane.xlu0 %234
    %v236 = vrcp.pop %v232
    %v237 = vrcp.pop %v235
    %v238 = vmul.f32 %v227, %v236
    %v239 = vmul.f32 %v229, %v237
    %v240 = vpack.c.bf16 %v239, %v238
    %v241 = vpack.c.bf16 %v157, %v153
    %242 = vset.pattern.permute.xlu0 5
    %243 = vperm.xlu0 %242, %v155
    %v244 = vpop.permute.xlu0 %243
    %246 = vset.pattern.permute.xlu0 5
    %247 = vperm.xlu0 %246, %v159
    %v248 = vpop.permute.xlu0 %247
    %v250 = vlaneseq
    %v251 = vshrl.u32 %v250, 7
    %v252 = vsub.s32 1, %v251
    %v253 = vrot.slane %v177, %v252
    %v254 = vadd.f32 %v244, %v253
    %v255 = vadd.f32 %v248, %v253
    %vm256 = vcmp.gt.f32.partialorder %v254, 0.0
    %vm257 = vcmp.gt.f32.partialorder %v255, 0.0
    %v258 = vmul.f32 %v254, 0.01
    %v259 = vmul.f32 %v255, 0.01
    %v260 = vsel %vm256, %v254, %v258
    %v261 = vsel %vm257, %v255, %v259
    %v262 = vadd.f32 %v260, %v91
    %v263 = vadd.f32 %v261, %v92
    %v264 = vsel %vm217, %v262, -inf
    %265 = vmax.xlane.f32.xlu0 %v264
    %v266 = vpop.xlane.xlu0 %265
    %v267 = vsel %vm217, %v263, -inf
    %268 = vmax.xlane.f32.xlu0 %v267
    %v269 = vpop.xlane.xlu0 %268
    %v270 = vsub.f32 %v262, %v266
    %v271 = vsub.f32 %v263, %v269
    %v272 = vmul.f32 %v270, 1.442695
    %v273 = vpow.pop %v272
    %v274 = vmul.f32 %v271, 1.442695
    %v275 = vpow.pop %v274
    %v276 = vsel %vm217, %v273, 0.0
    %277 = vadd.xlane.f32.xlu0 %v276
    %v278 = vpop.xlane.xlu0 %277
    %v279 = vsel %vm217, %v275, 0.0
    %280 = vadd.xlane.f32.xlu0 %v279
    %v281 = vpop.xlane.xlu0 %280
    %v282 = vrcp.pop %v278
    %v283 = vrcp.pop %v281
    %v284 = vmul.f32 %v273, %v282
    %v285 = vmul.f32 %v275, %v283
    %v286 = vpack.c.bf16 %v285, %v284
    %288 = vrot.lane.b32.xlu0 %v241, 96
    %v289 = vpop.permute.xlu0 %288
    %v292 = vsel %vm217, %v286, 0
    %294 = vmatprep.subr.bf16.mxu0 0
    %295 = vmatpush1.bf16.msra.mxu0 0
    %296 = vmatprep.subr.bf16.mxu0 0
    %297 = vmatpush1.bf16.msra.mxu0 0
    %298 = vmatprep.subr.bf16.mxu0 0
    %299 = vmatpush1.bf16.msra.mxu0 0
    %300 = vmatprep.subr.bf16.mxu0 0
    %301 = vmatpush1.bf16.msra.mxu0 0
    %302 = vmatprep.subr.bf16.mxu0 0
    %303 = vmatpush1.bf16.msra.mxu0 0
    %304 = vmatprep.subr.bf16.mxu0 0
    %305 = vmatpush1.bf16.msra.mxu0 0
    %306 = vmatprep.subr.bf16.mxu0 0
    %307 = vmatpush1.bf16.msra.mxu0 0
    %308 = vmatprep.subr.bf16.mxu0 0
    %309 = vmatpush1.bf16.msra.mxu0 %v289
    %310 = vmatprep.subr.bf16.mxu0 0
    %311 = vmatpush2.bf16.msra.mxu0 0
    %312 = vmatprep.subr.bf16.mxu0 0
    %313 = vmatpush2.bf16.msra.mxu0 0
    %314 = vmatprep.subr.bf16.mxu0 0
    %315 = vmatpush2.bf16.msra.mxu0 0
    %316 = vmatprep.subr.bf16.mxu0 0
    %317 = vmatpush2.bf16.msra.mxu0 0
    %318 = vmatprep.subr.bf16.mxu0 0
    %319 = vmatpush2.bf16.msra.mxu0 0
    %320 = vmatprep.subr.bf16.mxu0 0
    %321 = vmatpush2.bf16.msra.mxu0 0
    %322 = vmatprep.subr.bf16.mxu0 0
    %323 = vmatpush2.bf16.msra.mxu0 0
    %324 = vmatprep.subr.bf16.mxu0 0
    %325 = vmatpush2.bf16.msra.mxu0 0
    %326 = vmatprep.mubr.bf16.mxu0 0
    %327 = vmatmul.mubr.bf16.gmra.mxu0 %v292
    %v328 = vpop.f32.mrf.mxu0
    %v329 = vadd.f32 0.0, %v328
    %v330 = vpop.f32.mrf.mxu0
    %v331 = vpop.f32.mrf.mxu0
    %v332 = vadd.f32 0.0, %v331
    %v333 = vpop.f32.mrf.mxu0
    %334 = vdwg.mxu0
    %v336 = vsel %vm217, %v240, 0
    %338 = vmatprep.subr.bf16.mxu0 0
    %339 = vmatpush1.bf16.msra.mxu0 0
    %340 = vmatprep.subr.bf16.mxu0 0
    %341 = vmatpush1.bf16.msra.mxu0 0
    %342 = vmatprep.subr.bf16.mxu0 0
    %343 = vmatpush1.bf16.msra.mxu0 0
    %344 = vmatprep.subr.bf16.mxu0 0
    %345 = vmatpush1.bf16.msra.mxu0 0
    %346 = vmatprep.subr.bf16.mxu0 0
    %347 = vmatpush1.bf16.msra.mxu0 0
    %348 = vmatprep.subr.bf16.mxu0 0
    %349 = vmatpush1.bf16.msra.mxu0 0
    %350 = vmatprep.subr.bf16.mxu0 0
    %351 = vmatpush1.bf16.msra.mxu0 0
    %352 = vmatprep.subr.bf16.mxu0 0
    %353 = vmatpush1.bf16.msra.mxu0 %v241
    %354 = vmatprep.subr.bf16.mxu0 0
    %355 = vmatpush2.bf16.msra.mxu0 0
    %356 = vmatprep.subr.bf16.mxu0 0
    %357 = vmatpush2.bf16.msra.mxu0 0
    %358 = vmatprep.subr.bf16.mxu0 0
    %359 = vmatpush2.bf16.msra.mxu0 0
    %360 = vmatprep.subr.bf16.mxu0 0
    %361 = vmatpush2.bf16.msra.mxu0 0
    %362 = vmatprep.subr.bf16.mxu0 0
    %363 = vmatpush2.bf16.msra.mxu0 0
    %364 = vmatprep.subr.bf16.mxu0 0
    %365 = vmatpush2.bf16.msra.mxu0 0
    %366 = vmatprep.subr.bf16.mxu0 0
    %367 = vmatpush2.bf16.msra.mxu0 0
    %368 = vmatprep.subr.bf16.mxu0 0
    %369 = vmatpush2.bf16.msra.mxu0 0
    %370 = vmatprep.mubr.bf16.mxu0 0
    %371 = vmatmul.mubr.bf16.gmra.mxu0 %v336
    %v372 = vpop.f32.mrf.mxu0
    %v373 = vadd.f32 %v329, %v372
    %v374 = vpop.f32.mrf.mxu0
    %v375 = vpop.f32.mrf.mxu0
    %v376 = vadd.f32 %v332, %v375
    %v377 = vpop.f32.mrf.mxu0
    %378 = vdwg.mxu0
    %379 = vset.pattern.permute.xlu0 6
    %380 = vperm.xlu0 %379, %v155
    %v381 = vpop.permute.xlu0 %380
    %383 = vset.pattern.permute.xlu0 6
    %384 = vperm.xlu0 %383, %v159
    %v385 = vpop.permute.xlu0 %384
    %v387 = vlaneseq
    %v388 = vshrl.u32 %v387, 7
    %v389 = vsub.s32 2, %v388
    %v390 = vrot.slane %v177, %v389
    %v391 = vadd.f32 %v381, %v390
    %v392 = vadd.f32 %v385, %v390
    %vm393 = vcmp.gt.f32.partialorder %v391, 0.0
    %vm394 = vcmp.gt.f32.partialorder %v392, 0.0
    %v395 = vmul.f32 %v391, 0.01
    %v396 = vmul.f32 %v392, 0.01
    %v397 = vsel %vm393, %v391, %v395
    %v398 = vsel %vm394, %v392, %v396
    %v399 = vadd.f32 %v397, %v91
    %v400 = vadd.f32 %v398, %v92
    %v401 = vsel %vm217, %v399, -inf
    %402 = vmax.xlane.f32.xlu0 %v401
    %v403 = vpop.xlane.xlu0 %402
    %v404 = vsel %vm217, %v400, -inf
    %405 = vmax.xlane.f32.xlu0 %v404
    %v406 = vpop.xlane.xlu0 %405
    %v407 = vsub.f32 %v399, %v403
    %v408 = vsub.f32 %v400, %v406
    %v409 = vmul.f32 %v407, 1.442695
    %v410 = vpow.pop %v409
    %v411 = vmul.f32 %v408, 1.442695
    %v412 = vpow.pop %v411
    %v413 = vsel %vm217, %v410, 0.0
    %414 = vadd.xlane.f32.xlu0 %v413
    %v415 = vpop.xlane.xlu0 %414
    %v416 = vsel %vm217, %v412, 0.0
    %417 = vadd.xlane.f32.xlu0 %v416
    %v418 = vpop.xlane.xlu0 %417
    %v419 = vrcp.pop %v415
    %v420 = vrcp.pop %v418
    %v421 = vmul.f32 %v410, %v419
    %v422 = vmul.f32 %v412, %v420
    %v423 = vpack.c.bf16 %v422, %v421
    %424 = vrot.lane.b32.xlu0 %v241, 64
    %v425 = vpop.permute.xlu0 %424
    %v428 = vsel %vm217, %v423, 0
    %430 = vmatprep.subr.bf16.mxu0 0
    %431 = vmatpush1.bf16.msra.mxu0 0
    %432 = vmatprep.subr.bf16.mxu0 0
    %433 = vmatpush1.bf16.msra.mxu0 0
    %434 = vmatprep.subr.bf16.mxu0 0
    %435 = vmatpush1.bf16.msra.mxu0 0
    %436 = vmatprep.subr.bf16.mxu0 0
    %437 = vmatpush1.bf16.msra.mxu0 0
    %438 = vmatprep.subr.bf16.mxu0 0
    %439 = vmatpush1.bf16.msra.mxu0 0
    %440 = vmatprep.subr.bf16.mxu0 0
    %441 = vmatpush1.bf16.msra.mxu0 0
    %442 = vmatprep.subr.bf16.mxu0 0
    %443 = vmatpush1.bf16.msra.mxu0 0
    %444 = vmatprep.subr.bf16.mxu0 0
    %445 = vmatpush1.bf16.msra.mxu0 %v425
    %446 = vmatprep.subr.bf16.mxu0 0
    %447 = vmatpush2.bf16.msra.mxu0 0
    %448 = vmatprep.subr.bf16.mxu0 0
    %449 = vmatpush2.bf16.msra.mxu0 0
    %450 = vmatprep.subr.bf16.mxu0 0
    %451 = vmatpush2.bf16.msra.mxu0 0
    %452 = vmatprep.subr.bf16.mxu0 0
    %453 = vmatpush2.bf16.msra.mxu0 0
    %454 = vmatprep.subr.bf16.mxu0 0
    %455 = vmatpush2.bf16.msra.mxu0 0
    %456 = vmatprep.subr.bf16.mxu0 0
    %457 = vmatpush2.bf16.msra.mxu0 0
    %458 = vmatprep.subr.bf16.mxu0 0
    %459 = vmatpush2.bf16.msra.mxu0 0
    %460 = vmatprep.subr.bf16.mxu0 0
    %461 = vmatpush2.bf16.msra.mxu0 0
    %462 = vmatprep.mubr.bf16.mxu0 0
    %463 = vmatmul.mubr.bf16.gmra.mxu0 %v428
    %v464 = vpop.f32.mrf.mxu0
    %v465 = vadd.f32 0.0, %v464
    %v466 = vpop.f32.mrf.mxu0
    %v467 = vpop.f32.mrf.mxu0
    %v468 = vadd.f32 0.0, %v467
    %v469 = vpop.f32.mrf.mxu0
    %470 = vdwg.mxu0
    %v471 = vadd.f32 %v373, %v465
    %v472 = vadd.f32 %v376, %v468
    %473 = vset.pattern.permute.xlu0 7
    %474 = vperm.xlu0 %473, %v155
    %v475 = vpop.permute.xlu0 %474
    %477 = vset.pattern.permute.xlu0 7
    %478 = vperm.xlu0 %477, %v159
    %v479 = vpop.permute.xlu0 %478
    %v481 = vlaneseq
    %v482 = vshrl.u32 %v481, 7
    %v483 = vsub.s32 3, %v482
    %v484 = vrot.slane %v177, %v483
    %v485 = vadd.f32 %v475, %v484
    %v486 = vadd.f32 %v479, %v484
    %vm487 = vcmp.gt.f32.partialorder %v485, 0.0
    %vm488 = vcmp.gt.f32.partialorder %v486, 0.0
    %v489 = vmul.f32 %v485, 0.01
    %v490 = vmul.f32 %v486, 0.01
    %v491 = vsel %vm487, %v485, %v489
    %v492 = vsel %vm488, %v486, %v490
    %v493 = vadd.f32 %v491, %v91
    %v494 = vadd.f32 %v492, %v92
    %v495 = vsel %vm217, %v493, -inf
    %496 = vmax.xlane.f32.xlu0 %v495
    %v497 = vpop.xlane.xlu0 %496
    %v498 = vsel %vm217, %v494, -inf
    %499 = vmax.xlane.f32.xlu0 %v498
    %v500 = vpop.xlane.xlu0 %499
    %v501 = vsub.f32 %v493, %v497
    %v502 = vsub.f32 %v494, %v500
    %v503 = vmul.f32 %v501, 1.442695
    %v504 = vpow.pop %v503
    %v505 = vmul.f32 %v502, 1.442695
    %v506 = vpow.pop %v505
    %v507 = vsel %vm217, %v504, 0.0
    %508 = vadd.xlane.f32.xlu0 %v507
    %v509 = vpop.xlane.xlu0 %508
    %v510 = vsel %vm217, %v506, 0.0
    %511 = vadd.xlane.f32.xlu0 %v510
    %v512 = vpop.xlane.xlu0 %511
    %v513 = vrcp.pop %v509
    %v514 = vrcp.pop %v512
    %v515 = vmul.f32 %v504, %v513
    %v516 = vmul.f32 %v506, %v514
    %v517 = vpack.c.bf16 %v516, %v515
    %518 = vrot.lane.b32.xlu0 %v241, 32
    %v519 = vpop.permute.xlu0 %518
    %v522 = vsel %vm217, %v517, 0
    %524 = vmatprep.subr.bf16.mxu0 0
    %525 = vmatpush1.bf16.msra.mxu0 0
    %526 = vmatprep.subr.bf16.mxu0 0
    %527 = vmatpush1.bf16.msra.mxu0 0
    %528 = vmatprep.subr.bf16.mxu0 0
    %529 = vmatpush1.bf16.msra.mxu0 0
    %530 = vmatprep.subr.bf16.mxu0 0
    %531 = vmatpush1.bf16.msra.mxu0 0
    %532 = vmatprep.subr.bf16.mxu0 0
    %533 = vmatpush1.bf16.msra.mxu0 0
    %534 = vmatprep.subr.bf16.mxu0 0
    %535 = vmatpush1.bf16.msra.mxu0 0
    %536 = vmatprep.subr.bf16.mxu0 0
    %537 = vmatpush1.bf16.msra.mxu0 0
    %538 = vmatprep.subr.bf16.mxu0 0
    %539 = vmatpush1.bf16.msra.mxu0 %v519
    %540 = vmatprep.subr.bf16.mxu0 0
    %541 = vmatpush2.bf16.msra.mxu0 0
    %542 = vmatprep.subr.bf16.mxu0 0
    %543 = vmatpush2.bf16.msra.mxu0 0
    %544 = vmatprep.subr.bf16.mxu0 0
    %545 = vmatpush2.bf16.msra.mxu0 0
    %546 = vmatprep.subr.bf16.mxu0 0
    %547 = vmatpush2.bf16.msra.mxu0 0
    %548 = vmatprep.subr.bf16.mxu0 0
    %549 = vmatpush2.bf16.msra.mxu0 0
    %550 = vmatprep.subr.bf16.mxu0 0
    %551 = vmatpush2.bf16.msra.mxu0 0
    %552 = vmatprep.subr.bf16.mxu0 0
    %553 = vmatpush2.bf16.msra.mxu0 0
    %554 = vmatprep.subr.bf16.mxu0 0
    %555 = vmatpush2.bf16.msra.mxu0 0
    %556 = vmatprep.mubr.bf16.mxu0 0
    %557 = vmatmul.mubr.bf16.gmra.mxu0 %v522
    %v558 = vpop.f32.mrf.mxu0
    %v559 = vadd.f32 0.0, %v558
    %v560 = vpop.f32.mrf.mxu0
    %v561 = vpop.f32.mrf.mxu0
    %v562 = vadd.f32 0.0, %v561
    %v563 = vpop.f32.mrf.mxu0
    %564 = vdwg.mxu0
    %v565 = vadd.f32 %v471, %v559
    %v566 = vadd.f32 %v472, %v562
    %v567 = vmul.f32 %v565, 0.25
    %v568 = vmul.f32 %v566, 0.25
    %v569 = vpack.c.bf16 %v568, %v567
    %v570 = vld [vmem:[%s3] sm:$0xff]
    %v571 = vld [vmem:[%s3 + $0x8] sm:$0xff]
    %v572 = vld [vmem:[%s3 + $0x10] sm:$0xff]
    %v573 = vld [vmem:[%s3 + $0x18] sm:$0xff]
    %v578 = vunpack.c.l.b16 %v570
    %v579 = vunpack.c.h.b16 %v570
    %v580 = vunpack.c.l.b16 %v571
    %v581 = vunpack.c.h.b16 %v571
    %v582 = vunpack.c.l.b16 %v572
    %v583 = vunpack.c.h.b16 %v572
    %v584 = vunpack.c.l.b16 %v573
    %v585 = vunpack.c.h.b16 %v573
    %v586 = vpack.c.b16 %v580, %v578
    %v587 = vpack.c.b16 %v581, %v579
    %v588 = vpack.c.b16 %v584, %v582
    %v589 = vpack.c.b16 %v585, %v583
    %vm594 = vcmask 261120
    %v596 = vsel %vm594, %v569, 0
    %598 = vmatprep.subr.bf16.mxu0 0
    %599 = vmatpush1.bf16.msra.mxu0 0
    %600 = vmatprep.subr.bf16.mxu0 0
    %601 = vmatpush1.bf16.msra.mxu0 0
    %602 = vmatprep.subr.bf16.mxu0 0
    %603 = vmatpush1.bf16.msra.mxu0 0
    %604 = vmatprep.subr.bf16.mxu0 0
    %605 = vmatpush1.bf16.msra.mxu0 0
    %606 = vmatprep.subr.bf16.mxu0 0
    %607 = vmatpush1.bf16.msra.mxu0 0
    %608 = vmatprep.subr.bf16.mxu0 0
    %609 = vmatpush1.bf16.msra.mxu0 0
    %610 = vmatprep.subr.bf16.mxu0 %v589
    %611 = vmatpush1.bf16.msra.mxu0 %v588
    %612 = vmatprep.subr.bf16.mxu0 %v587
    %613 = vmatpush1.bf16.msra.mxu0 %v586
    %614 = vmatprep.subr.bf16.mxu0 0
    %615 = vmatpush2.bf16.msra.mxu0 0
    %616 = vmatprep.subr.bf16.mxu0 0
    %617 = vmatpush2.bf16.msra.mxu0 0
    %618 = vmatprep.subr.bf16.mxu0 0
    %619 = vmatpush2.bf16.msra.mxu0 0
    %620 = vmatprep.subr.bf16.mxu0 0
    %621 = vmatpush2.bf16.msra.mxu0 0
    %622 = vmatprep.subr.bf16.mxu0 0
    %623 = vmatpush2.bf16.msra.mxu0 0
    %624 = vmatprep.subr.bf16.mxu0 0
    %625 = vmatpush2.bf16.msra.mxu0 0
    %626 = vmatprep.subr.bf16.mxu0 0
    %627 = vmatpush2.bf16.msra.mxu0 0
    %628 = vmatprep.subr.bf16.mxu0 0
    %629 = vmatpush2.bf16.msra.mxu0 0
    %630 = vmatprep.mubr.bf16.mxu0 0
    %631 = vmatmul.mubr.bf16.gmra.mxu0 %v596
    %v632 = vpop.f32.mrf.mxu0
    %v633 = vadd.f32 0.0, %v632
    %v634 = vpop.f32.mrf.mxu0
    %v635 = vadd.f32 0.0, %v634
    %v636 = vpop.f32.mrf.mxu0
    %v637 = vadd.f32 0.0, %v636
    %v638 = vpop.f32.mrf.mxu0
    %v639 = vadd.f32 0.0, %v638
    %640 = vdwg.mxu0
    %641 = vxpose.xlu0.b32.start [1/16] %v635, 128
    %642 = vxpose.xlu0.b32.cont [2/16] %v639, 128
    %643 = vxpose.xlu0.b32.cont [3/16] 0.0, 128
    %644 = vxpose.xlu0.b32.cont [4/16] 0.0, 128
    %645 = vxpose.xlu0.b32.cont [5/16] 0.0, 128
    %646 = vxpose.xlu0.b32.cont [6/16] 0.0, 128
    %647 = vxpose.xlu0.b32.cont [7/16] 0.0, 128
    %648 = vxpose.xlu0.b32.cont [8/16] 0.0, 128
    %649 = vxpose.xlu0.b32.cont [9/16] 0.0, 128
    %650 = vxpose.xlu0.b32.cont [10/16] 0.0, 128
    %651 = vxpose.xlu0.b32.cont [11/16] 0.0, 128
    %652 = vxpose.xlu0.b32.cont [12/16] 0.0, 128
    %653 = vxpose.xlu0.b32.cont [13/16] 0.0, 128
    %654 = vxpose.xlu0.b32.cont [14/16] 0.0, 128
    %655 = vxpose.xlu0.b32.cont [15/16] 0.0, 128
    %656 = vxpose.xlu0.b32.end [16/16] 0.0, 128
    %v657 = vpop.trf.xlu0
    %v658 = vpop.trf.xlu0
    %v659 = vpop.trf.xlu0
    %v660 = vpop.trf.xlu0
    %v661 = vpop.trf.xlu0
    %v662 = vpop.trf.xlu0
    %v663 = vpop.trf.xlu0
    %v664 = vpop.trf.xlu0
    %v665 = vpop.trf.xlu0
    %v666 = vpop.trf.xlu0
    %v667 = vpop.trf.xlu0
    %v668 = vpop.trf.xlu0
    %v669 = vpop.trf.xlu0
    %v670 = vpop.trf.xlu0
    %v671 = vpop.trf.xlu0
    %v672 = vpop.trf.xlu0
    %674 = vset.pattern.permute.xlu0 4
    %675 = vperm.xlu0 %674, %v635
    %v676 = vpop.permute.xlu0 %675
    %679 = vset.pattern.permute.xlu0 4
    %680 = vperm.xlu0 %679, %v639
    %v681 = vpop.permute.xlu0 %680
    %v683 = vlaneseq
    %v684 = vshrl.u32 %v683, 7
    %v685 = vsub.s32 0, %v684
    %v686 = vrot.slane %v657, %v685
    %v687 = vadd.f32 %v676, %v686
    %v688 = vadd.f32 %v681, %v686
    %vm689 = vcmp.gt.f32.partialorder %v687, 0.0
    %vm690 = vcmp.gt.f32.partialorder %v688, 0.0
    %v691 = vmul.f32 %v687, 0.01
    %v692 = vmul.f32 %v688, 0.01
    %v693 = vsel %vm689, %v687, %v691
    %v694 = vsel %vm690, %v688, %v692
    %v695 = vadd.f32 %v693, %v91
    %v696 = vadd.f32 %v694, %v92
    %v697 = vsel %vm217, %v695, -inf
    %698 = vmax.xlane.f32.xlu0 %v697
    %v699 = vpop.xlane.xlu0 %698
    %v700 = vsel %vm217, %v696, -inf
    %701 = vmax.xlane.f32.xlu0 %v700
    %v702 = vpop.xlane.xlu0 %701
    %v703 = vsub.f32 %v695, %v699
    %v704 = vsub.f32 %v696, %v702
    %v705 = vmul.f32 %v703, 1.442695
    %v706 = vpow.pop %v705
    %v707 = vmul.f32 %v704, 1.442695
    %v708 = vpow.pop %v707
    %v709 = vsel %vm217, %v706, 0.0
    %710 = vadd.xlane.f32.xlu0 %v709
    %v711 = vpop.xlane.xlu0 %710
    %v712 = vsel %vm217, %v708, 0.0
    %713 = vadd.xlane.f32.xlu0 %v712
    %v714 = vpop.xlane.xlu0 %713
    %v715 = vrcp.pop %v711
    %v716 = vrcp.pop %v714
    %v717 = vmul.f32 %v706, %v715
    %v718 = vmul.f32 %v708, %v716
    %v719 = vpack.c.bf16 %v718, %v717
    %v720 = vpack.c.bf16 %v637, %v633
    %721 = vset.pattern.permute.xlu0 5
    %722 = vperm.xlu0 %721, %v635
    %v723 = vpop.permute.xlu0 %722
    %725 = vset.pattern.permute.xlu0 5
    %726 = vperm.xlu0 %725, %v639
    %v727 = vpop.permute.xlu0 %726
    %v729 = vlaneseq
    %v730 = vshrl.u32 %v729, 7
    %v731 = vsub.s32 1, %v730
    %v732 = vrot.slane %v657, %v731
    %v733 = vadd.f32 %v723, %v732
    %v734 = vadd.f32 %v727, %v732
    %vm735 = vcmp.gt.f32.partialorder %v733, 0.0
    %vm736 = vcmp.gt.f32.partialorder %v734, 0.0
    %v737 = vmul.f32 %v733, 0.01
    %v738 = vmul.f32 %v734, 0.01
    %v739 = vsel %vm735, %v733, %v737
    %v740 = vsel %vm736, %v734, %v738
    %v741 = vadd.f32 %v739, %v91
    %v742 = vadd.f32 %v740, %v92
    %v743 = vsel %vm217, %v741, -inf
    %744 = vmax.xlane.f32.xlu0 %v743
    %v745 = vpop.xlane.xlu0 %744
    %v746 = vsel %vm217, %v742, -inf
    %747 = vmax.xlane.f32.xlu0 %v746
    %v748 = vpop.xlane.xlu0 %747
    %v749 = vsub.f32 %v741, %v745
    %v750 = vsub.f32 %v742, %v748
    %v751 = vmul.f32 %v749, 1.442695
    %v752 = vpow.pop %v751
    %v753 = vmul.f32 %v750, 1.442695
    %v754 = vpow.pop %v753
    %v755 = vsel %vm217, %v752, 0.0
    %756 = vadd.xlane.f32.xlu0 %v755
    %v757 = vpop.xlane.xlu0 %756
    %v758 = vsel %vm217, %v754, 0.0
    %759 = vadd.xlane.f32.xlu0 %v758
    %v760 = vpop.xlane.xlu0 %759
    %v761 = vrcp.pop %v757
    %v762 = vrcp.pop %v760
    %v763 = vmul.f32 %v752, %v761
    %v764 = vmul.f32 %v754, %v762
    %v765 = vpack.c.bf16 %v764, %v763
    %767 = vrot.lane.b32.xlu0 %v720, 96
    %v768 = vpop.permute.xlu0 %767
    %v771 = vsel %vm217, %v765, 0
    %773 = vmatprep.subr.bf16.mxu0 0
    %774 = vmatpush1.bf16.msra.mxu0 0
    %775 = vmatprep.subr.bf16.mxu0 0
    %776 = vmatpush1.bf16.msra.mxu0 0
    %777 = vmatprep.subr.bf16.mxu0 0
    %778 = vmatpush1.bf16.msra.mxu0 0
    %779 = vmatprep.subr.bf16.mxu0 0
    %780 = vmatpush1.bf16.msra.mxu0 0
    %781 = vmatprep.subr.bf16.mxu0 0
    %782 = vmatpush1.bf16.msra.mxu0 0
    %783 = vmatprep.subr.bf16.mxu0 0
    %784 = vmatpush1.bf16.msra.mxu0 0
    %785 = vmatprep.subr.bf16.mxu0 0
    %786 = vmatpush1.bf16.msra.mxu0 0
    %787 = vmatprep.subr.bf16.mxu0 0
    %788 = vmatpush1.bf16.msra.mxu0 %v768
    %789 = vmatprep.subr.bf16.mxu0 0
    %790 = vmatpush2.bf16.msra.mxu0 0
    %791 = vmatprep.subr.bf16.mxu0 0
    %792 = vmatpush2.bf16.msra.mxu0 0
    %793 = vmatprep.subr.bf16.mxu0 0
    %794 = vmatpush2.bf16.msra.mxu0 0
    %795 = vmatprep.subr.bf16.mxu0 0
    %796 = vmatpush2.bf16.msra.mxu0 0
    %797 = vmatprep.subr.bf16.mxu0 0
    %798 = vmatpush2.bf16.msra.mxu0 0
    %799 = vmatprep.subr.bf16.mxu0 0
    %800 = vmatpush2.bf16.msra.mxu0 0
    %801 = vmatprep.subr.bf16.mxu0 0
    %802 = vmatpush2.bf16.msra.mxu0 0
    %803 = vmatprep.subr.bf16.mxu0 0
    %804 = vmatpush2.bf16.msra.mxu0 0
    %805 = vmatprep.mubr.bf16.mxu0 0
    %806 = vmatmul.mubr.bf16.gmra.mxu0 %v771
    %v807 = vpop.f32.mrf.mxu0
    %v808 = vadd.f32 0.0, %v807
    %v809 = vpop.f32.mrf.mxu0
    %v810 = vpop.f32.mrf.mxu0
    %v811 = vadd.f32 0.0, %v810
    %v812 = vpop.f32.mrf.mxu0
    %813 = vdwg.mxu0
    %v815 = vsel %vm217, %v719, 0
    %817 = vmatprep.subr.bf16.mxu0 0
    %818 = vmatpush1.bf16.msra.mxu0 0
    %819 = vmatprep.subr.bf16.mxu0 0
    %820 = vmatpush1.bf16.msra.mxu0 0
    %821 = vmatprep.subr.bf16.mxu0 0
    %822 = vmatpush1.bf16.msra.mxu0 0
    %823 = vmatprep.subr.bf16.mxu0 0
    %824 = vmatpush1.bf16.msra.mxu0 0
    %825 = vmatprep.subr.bf16.mxu0 0
    %826 = vmatpush1.bf16.msra.mxu0 0
    %827 = vmatprep.subr.bf16.mxu0 0
    %828 = vmatpush1.bf16.msra.mxu0 0
    %829 = vmatprep.subr.bf16.mxu0 0
    %830 = vmatpush1.bf16.msra.mxu0 0
    %831 = vmatprep.subr.bf16.mxu0 0
    %832 = vmatpush1.bf16.msra.mxu0 %v720
    %833 = vmatprep.subr.bf16.mxu0 0
    %834 = vmatpush2.bf16.msra.mxu0 0
    %835 = vmatprep.subr.bf16.mxu0 0
    %836 = vmatpush2.bf16.msra.mxu0 0
    %837 = vmatprep.subr.bf16.mxu0 0
    %838 = vmatpush2.bf16.msra.mxu0 0
    %839 = vmatprep.subr.bf16.mxu0 0
    %840 = vmatpush2.bf16.msra.mxu0 0
    %841 = vmatprep.subr.bf16.mxu0 0
    %842 = vmatpush2.bf16.msra.mxu0 0
    %843 = vmatprep.subr.bf16.mxu0 0
    %844 = vmatpush2.bf16.msra.mxu0 0
    %845 = vmatprep.subr.bf16.mxu0 0
    %846 = vmatpush2.bf16.msra.mxu0 0
    %847 = vmatprep.subr.bf16.mxu0 0
    %848 = vmatpush2.bf16.msra.mxu0 0
    %849 = vmatprep.mubr.bf16.mxu0 0
    %850 = vmatmul.mubr.bf16.gmra.mxu0 %v815
    %v851 = vpop.f32.mrf.mxu0
    %v852 = vadd.f32 %v808, %v851
    %v853 = vpop.f32.mrf.mxu0
    %v854 = vpop.f32.mrf.mxu0
    %v855 = vadd.f32 %v811, %v854
    %v856 = vpop.f32.mrf.mxu0
    %857 = vdwg.mxu0
    %858 = vset.pattern.permute.xlu0 6
    %859 = vperm.xlu0 %858, %v635
    %v860 = vpop.permute.xlu0 %859
    %862 = vset.pattern.permute.xlu0 6
    %863 = vperm.xlu0 %862, %v639
    %v864 = vpop.permute.xlu0 %863
    %v866 = vlaneseq
    %v867 = vshrl.u32 %v866, 7
    %v868 = vsub.s32 2, %v867
    %v869 = vrot.slane %v657, %v868
    %v870 = vadd.f32 %v860, %v869
    %v871 = vadd.f32 %v864, %v869
    %vm872 = vcmp.gt.f32.partialorder %v870, 0.0
    %vm873 = vcmp.gt.f32.partialorder %v871, 0.0
    %v874 = vmul.f32 %v870, 0.01
    %v875 = vmul.f32 %v871, 0.01
    %v876 = vsel %vm872, %v870, %v874
    %v877 = vsel %vm873, %v871, %v875
    %v878 = vadd.f32 %v876, %v91
    %v879 = vadd.f32 %v877, %v92
    %v880 = vsel %vm217, %v878, -inf
    %881 = vmax.xlane.f32.xlu0 %v880
    %v882 = vpop.xlane.xlu0 %881
    %v883 = vsel %vm217, %v879, -inf
    %884 = vmax.xlane.f32.xlu0 %v883
    %v885 = vpop.xlane.xlu0 %884
    %v886 = vsub.f32 %v878, %v882
    %v887 = vsub.f32 %v879, %v885
    %v888 = vmul.f32 %v886, 1.442695
    %v889 = vpow.pop %v888
    %v890 = vmul.f32 %v887, 1.442695
    %v891 = vpow.pop %v890
    %v892 = vsel %vm217, %v889, 0.0
    %893 = vadd.xlane.f32.xlu0 %v892
    %v894 = vpop.xlane.xlu0 %893
    %v895 = vsel %vm217, %v891, 0.0
    %896 = vadd.xlane.f32.xlu0 %v895
    %v897 = vpop.xlane.xlu0 %896
    %v898 = vrcp.pop %v894
    %v899 = vrcp.pop %v897
    %v900 = vmul.f32 %v889, %v898
    %v901 = vmul.f32 %v891, %v899
    %v902 = vpack.c.bf16 %v901, %v900
    %903 = vrot.lane.b32.xlu0 %v720, 64
    %v904 = vpop.permute.xlu0 %903
    %v907 = vsel %vm217, %v902, 0
    %909 = vmatprep.subr.bf16.mxu0 0
    %910 = vmatpush1.bf16.msra.mxu0 0
    %911 = vmatprep.subr.bf16.mxu0 0
    %912 = vmatpush1.bf16.msra.mxu0 0
    %913 = vmatprep.subr.bf16.mxu0 0
    %914 = vmatpush1.bf16.msra.mxu0 0
    %915 = vmatprep.subr.bf16.mxu0 0
    %916 = vmatpush1.bf16.msra.mxu0 0
    %917 = vmatprep.subr.bf16.mxu0 0
    %918 = vmatpush1.bf16.msra.mxu0 0
    %919 = vmatprep.subr.bf16.mxu0 0
    %920 = vmatpush1.bf16.msra.mxu0 0
    %921 = vmatprep.subr.bf16.mxu0 0
    %922 = vmatpush1.bf16.msra.mxu0 0
    %923 = vmatprep.subr.bf16.mxu0 0
    %924 = vmatpush1.bf16.msra.mxu0 %v904
    %925 = vmatprep.subr.bf16.mxu0 0
    %926 = vmatpush2.bf16.msra.mxu0 0
    %927 = vmatprep.subr.bf16.mxu0 0
    %928 = vmatpush2.bf16.msra.mxu0 0
    %929 = vmatprep.subr.bf16.mxu0 0
    %930 = vmatpush2.bf16.msra.mxu0 0
    %931 = vmatprep.subr.bf16.mxu0 0
    %932 = vmatpush2.bf16.msra.mxu0 0
    %933 = vmatprep.subr.bf16.mxu0 0
    %934 = vmatpush2.bf16.msra.mxu0 0
    %935 = vmatprep.subr.bf16.mxu0 0
    %936 = vmatpush2.bf16.msra.mxu0 0
    %937 = vmatprep.subr.bf16.mxu0 0
    %938 = vmatpush2.bf16.msra.mxu0 0
    %939 = vmatprep.subr.bf16.mxu0 0
    %940 = vmatpush2.bf16.msra.mxu0 0
    %941 = vmatprep.mubr.bf16.mxu0 0
    %942 = vmatmul.mubr.bf16.gmra.mxu0 %v907
    %v943 = vpop.f32.mrf.mxu0
    %v944 = vadd.f32 0.0, %v943
    %v945 = vpop.f32.mrf.mxu0
    %v946 = vpop.f32.mrf.mxu0
    %v947 = vadd.f32 0.0, %v946
    %v948 = vpop.f32.mrf.mxu0
    %949 = vdwg.mxu0
    %v950 = vadd.f32 %v852, %v944
    %v951 = vadd.f32 %v855, %v947
    %952 = vset.pattern.permute.xlu0 7
    %953 = vperm.xlu0 %952, %v635
    %v954 = vpop.permute.xlu0 %953
    %956 = vset.pattern.permute.xlu0 7
    %957 = vperm.xlu0 %956, %v639
    %v958 = vpop.permute.xlu0 %957
    %v960 = vlaneseq
    %v961 = vshrl.u32 %v960, 7
    %v962 = vsub.s32 3, %v961
    %v963 = vrot.slane %v657, %v962
    %v964 = vadd.f32 %v954, %v963
    %v965 = vadd.f32 %v958, %v963
    %vm966 = vcmp.gt.f32.partialorder %v964, 0.0
    %vm967 = vcmp.gt.f32.partialorder %v965, 0.0
    %v968 = vmul.f32 %v964, 0.01
    %v969 = vmul.f32 %v965, 0.01
    %v970 = vsel %vm966, %v964, %v968
    %v971 = vsel %vm967, %v965, %v969
    %v972 = vadd.f32 %v970, %v91
    %v973 = vadd.f32 %v971, %v92
    %v974 = vsel %vm217, %v972, -inf
    %975 = vmax.xlane.f32.xlu0 %v974
    %v976 = vpop.xlane.xlu0 %975
    %v977 = vsel %vm217, %v973, -inf
    %978 = vmax.xlane.f32.xlu0 %v977
    %v979 = vpop.xlane.xlu0 %978
    %v980 = vsub.f32 %v972, %v976
    %v981 = vsub.f32 %v973, %v979
    %v982 = vmul.f32 %v980, 1.442695
    %v983 = vpow.pop %v982
    %v984 = vmul.f32 %v981, 1.442695
    %v985 = vpow.pop %v984
    %v986 = vsel %vm217, %v983, 0.0
    %987 = vadd.xlane.f32.xlu0 %v986
    %v988 = vpop.xlane.xlu0 %987
    %v989 = vsel %vm217, %v985, 0.0
    %990 = vadd.xlane.f32.xlu0 %v989
    %v991 = vpop.xlane.xlu0 %990
    %v992 = vrcp.pop %v988
    %v993 = vrcp.pop %v991
    %v994 = vmul.f32 %v983, %v992
    %v995 = vmul.f32 %v985, %v993
    %v996 = vpack.c.bf16 %v995, %v994
    %997 = vrot.lane.b32.xlu0 %v720, 32
    %v998 = vpop.permute.xlu0 %997
    %v1001 = vsel %vm217, %v996, 0
    %1003 = vmatprep.subr.bf16.mxu0 0
    %1004 = vmatpush1.bf16.msra.mxu0 0
    %1005 = vmatprep.subr.bf16.mxu0 0
    %1006 = vmatpush1.bf16.msra.mxu0 0
    %1007 = vmatprep.subr.bf16.mxu0 0
    %1008 = vmatpush1.bf16.msra.mxu0 0
    %1009 = vmatprep.subr.bf16.mxu0 0
    %1010 = vmatpush1.bf16.msra.mxu0 0
    %1011 = vmatprep.subr.bf16.mxu0 0
    %1012 = vmatpush1.bf16.msra.mxu0 0
    %1013 = vmatprep.subr.bf16.mxu0 0
    %1014 = vmatpush1.bf16.msra.mxu0 0
    %1015 = vmatprep.subr.bf16.mxu0 0
    %1016 = vmatpush1.bf16.msra.mxu0 0
    %1017 = vmatprep.subr.bf16.mxu0 0
    %1018 = vmatpush1.bf16.msra.mxu0 %v998
    %1019 = vmatprep.subr.bf16.mxu0 0
    %1020 = vmatpush2.bf16.msra.mxu0 0
    %1021 = vmatprep.subr.bf16.mxu0 0
    %1022 = vmatpush2.bf16.msra.mxu0 0
    %1023 = vmatprep.subr.bf16.mxu0 0
    %1024 = vmatpush2.bf16.msra.mxu0 0
    %1025 = vmatprep.subr.bf16.mxu0 0
    %1026 = vmatpush2.bf16.msra.mxu0 0
    %1027 = vmatprep.subr.bf16.mxu0 0
    %1028 = vmatpush2.bf16.msra.mxu0 0
    %1029 = vmatprep.subr.bf16.mxu0 0
    %1030 = vmatpush2.bf16.msra.mxu0 0
    %1031 = vmatprep.subr.bf16.mxu0 0
    %1032 = vmatpush2.bf16.msra.mxu0 0
    %1033 = vmatprep.subr.bf16.mxu0 0
    %1034 = vmatpush2.bf16.msra.mxu0 0
    %1035 = vmatprep.mubr.bf16.mxu0 0
    %1036 = vmatmul.mubr.bf16.gmra.mxu0 %v1001
    %v1037 = vpop.f32.mrf.mxu0
    %v1038 = vadd.f32 0.0, %v1037
    %v1039 = vpop.f32.mrf.mxu0
    %v1040 = vpop.f32.mrf.mxu0
    %v1041 = vadd.f32 0.0, %v1040
    %v1042 = vpop.f32.mrf.mxu0
    %1043 = vdwg.mxu0
    %v1044 = vadd.f32 %v950, %v1038
    %v1045 = vadd.f32 %v951, %v1041
    %v1046 = vmul.f32 %v1044, 0.25
    %v1047 = vmul.f32 %v1045, 0.25
    %v1048 = vlaneseq
    %v1049 = vshrl.u32 %v1048, 7
    %v1050 = vsub.s32 1, %v1049
    %v1051 = vrot.slane %v97, %v1050
    %1053 = vrot.lane.b32.xlu0 %v1051, 8
    %v1054 = vpop.permute.xlu0 %1053
    %v1056 = vadd.f32 %v635, %v1054
    %v1057 = vadd.f32 %v639, %v1054
    %v1058 = vpack.c.bf16 %v1047, %v1046
    %v1059 = vlaneseq
    %v1060 = vshrl.u32 %v1059, 7
    %v1061 = vsub.s32 0, %v1060
    %v1062 = vrot.slane %v97, %v1061
    %v1067 = vunpack.c.l.b16 %v93
    %v1068 = vunpack.c.l.b16 %v94
    %v1069 = vunpack.c.l.b16 %v95
    %v1070 = vunpack.c.l.b16 %v96
    %v1071 = vpack.c.b16 %v1068, %v1067
    %v1072 = vpack.c.b16 %v1070, %v1069
    %v1076 = vsel %vm594, %v1058, 0
    %1078 = vmatprep.subr.bf16.mxu0 0
    %1079 = vmatpush1.bf16.msra.mxu0 0
    %1080 = vmatprep.subr.bf16.mxu0 0
    %1081 = vmatpush1.bf16.msra.mxu0 0
    %1082 = vmatprep.subr.bf16.mxu0 0
    %1083 = vmatpush1.bf16.msra.mxu0 0
    %1084 = vmatprep.subr.bf16.mxu0 0
    %1085 = vmatpush1.bf16.msra.mxu0 0
    %1086 = vmatprep.subr.bf16.mxu0 0
    %1087 = vmatpush1.bf16.msra.mxu0 0
    %1088 = vmatprep.subr.bf16.mxu0 0
    %1089 = vmatpush1.bf16.msra.mxu0 0
    %1090 = vmatprep.subr.bf16.mxu0 0
    %1091 = vmatpush1.bf16.msra.mxu0 %v1072
    %1092 = vmatprep.subr.bf16.mxu0 0
    %1093 = vmatpush1.bf16.msra.mxu0 %v1071
    %1094 = vmatprep.subr.bf16.mxu0 0
    %1095 = vmatpush2.bf16.msra.mxu0 0
    %1096 = vmatprep.subr.bf16.mxu0 0
    %1097 = vmatpush2.bf16.msra.mxu0 0
    %1098 = vmatprep.subr.bf16.mxu0 0
    %1099 = vmatpush2.bf16.msra.mxu0 0
    %1100 = vmatprep.subr.bf16.mxu0 0
    %1101 = vmatpush2.bf16.msra.mxu0 0
    %1102 = vmatprep.subr.bf16.mxu0 0
    %1103 = vmatpush2.bf16.msra.mxu0 0
    %1104 = vmatprep.subr.bf16.mxu0 0
    %1105 = vmatpush2.bf16.msra.mxu0 0
    %1106 = vmatprep.subr.bf16.mxu0 0
    %1107 = vmatpush2.bf16.msra.mxu0 0
    %1108 = vmatprep.subr.bf16.mxu0 0
    %1109 = vmatpush2.bf16.msra.mxu0 0
    %1110 = vmatprep.mubr.bf16.mxu0 0
    %1111 = vmatmul.mubr.bf16.gmra.mxu0 %v1076
    %v1112 = vpop.f32.mrf.mxu0
    %v1113 = vadd.f32 %v1062, %v1112
    %v1114 = vpop.f32.mrf.mxu0
    %v1115 = vpop.f32.mrf.mxu0
    %v1116 = vadd.f32 %v1062, %v1115
    %v1117 = vpop.f32.mrf.mxu0
    %1118 = vdwg.mxu0
    %1121 = vrot.lane.b32.xlu0 %v1056, 120
    %v1122 = vpop.permute.xlu0 %1121
    %1123 = vrot.lane.b32.xlu0 %v1057, 120
    %v1124 = vpop.permute.xlu0 %1123
    %v1127 = vadd.f32 %v1113, %v1122
    %v1128 = vadd.f32 %v1116, %v1124
    %v1129 = vxor.u32 %v1127, 2147483648
    %v1130 = vxor.u32 %v1128, 2147483648
    %v1131 = vmul.f32 %v1129, 1.442695
    %v1132 = vpow.pop %v1131
    %v1133 = vmul.f32 %v1130, 1.442695
    %v1134 = vpow.pop %v1133
    %v1135 = vadd.f32 %v1132, 1.0
    %v1136 = vadd.f32 %v1134, 1.0
    %v1137 = vrcp.pop %v1135
    %v1138 = vmul.f32 1.0, %v1137
    %v1139 = vrcp.pop %v1136
    %v1140 = vmul.f32 1.0, %v1139
    %1141 = vrot.lane.b32.xlu0 %v1056, 56
    %v1142 = vpop.permute.xlu0 %1141
    %1143 = vrot.lane.b32.xlu0 %v1057, 56
    %v1144 = vpop.permute.xlu0 %1143
    %v1147 = vmul.f32 %v1138, %v1142
    %v1148 = vmul.f32 %v1140, %v1144
    %1151 = vrot.lane.b32.xlu0 %v1147, 64
    %v1152 = vpop.permute.xlu0 %1151
    %1153 = vrot.lane.b32.xlu0 %v1148, 64
    %v1154 = vpop.permute.xlu0 %1153
    %v1157 = vadd.f32 %v1113, %v1152
    %v1158 = vadd.f32 %v1116, %v1154
    %v1159 = vtanh.pop %v1157
    %v1160 = vtanh.pop %v1158
    %v1161 = vsub.f32 1.0, %v1138
    %v1162 = vsub.f32 1.0, %v1140
    %1165 = vrot.lane.b32.xlu0 %v1159, 96
    %v1166 = vpop.permute.xlu0 %1165
    %1167 = vrot.lane.b32.xlu0 %v1160, 96
    %v1168 = vpop.permute.xlu0 %1167
    %v1171 = vmul.f32 %v1161, %v1166
    %v1172 = vmul.f32 %v1162, %v1168
    %1175 = vrot.lane.b32.xlu0 %v567, 32
    %v1176 = vpop.permute.xlu0 %1175
    %1177 = vrot.lane.b32.xlu0 %v568, 32
    %v1178 = vpop.permute.xlu0 %1177
    %v1181 = vmul.f32 %v1138, %v1176
    %v1182 = vmul.f32 %v1140, %v1178
    %v1183 = vadd.f32 %v1171, %v1181
    %v1184 = vadd.f32 %v1172, %v1182
    %v1185 = vpack.c.bf16 %v1184, %v1183
    %v1186 = vld [vmem:[#allocation5] sm:$0xff]
    %v1187 = vld [vmem:[#allocation5 + $0x8] sm:$0xff]
    %v1188 = vld [vmem:[#allocation5 + $0x10] sm:$0xff]
    %v1189 = vld [vmem:[#allocation5 + $0x18] sm:$0xff]
    %1191 = vrot.lane.b32.xlu0 %v1185, 96
    %v1192 = vpop.permute.xlu0 %1191
    %v1197 = vunpack.c.l.b16 %v1186
    %v1198 = vunpack.c.h.b16 %v1186
    %v1199 = vunpack.c.l.b16 %v1187
    %v1200 = vunpack.c.h.b16 %v1187
    %v1201 = vunpack.c.l.b16 %v1188
    %v1202 = vunpack.c.h.b16 %v1188
    %v1203 = vunpack.c.l.b16 %v1189
    %v1204 = vunpack.c.h.b16 %v1189
    %v1205 = vpack.c.b16 %v1199, %v1197
    %v1206 = vpack.c.b16 %v1200, %v1198
    %v1207 = vpack.c.b16 %v1203, %v1201
    %v1208 = vpack.c.b16 %v1204, %v1202
    %v1214 = vsel %vm594, %v1192, 0
    %1216 = vmatprep.subr.bf16.mxu0 0
    %1217 = vmatpush1.bf16.msra.mxu0 0
    %1218 = vmatprep.subr.bf16.mxu0 0
    %1219 = vmatpush1.bf16.msra.mxu0 0
    %1220 = vmatprep.subr.bf16.mxu0 0
    %1221 = vmatpush1.bf16.msra.mxu0 0
    %1222 = vmatprep.subr.bf16.mxu0 0
    %1223 = vmatpush1.bf16.msra.mxu0 0
    %1224 = vmatprep.subr.bf16.mxu0 0
    %1225 = vmatpush1.bf16.msra.mxu0 0
    %1226 = vmatprep.subr.bf16.mxu0 0
    %1227 = vmatpush1.bf16.msra.mxu0 0
    %1228 = vmatprep.subr.bf16.mxu0 %v1208
    %1229 = vmatpush1.bf16.msra.mxu0 %v1207
    %1230 = vmatprep.subr.bf16.mxu0 %v1206
    %1231 = vmatpush1.bf16.msra.mxu0 %v1205
    %1232 = vmatprep.subr.bf16.mxu0 0
    %1233 = vmatpush2.bf16.msra.mxu0 0
    %1234 = vmatprep.subr.bf16.mxu0 0
    %1235 = vmatpush2.bf16.msra.mxu0 0
    %1236 = vmatprep.subr.bf16.mxu0 0
    %1237 = vmatpush2.bf16.msra.mxu0 0
    %1238 = vmatprep.subr.bf16.mxu0 0
    %1239 = vmatpush2.bf16.msra.mxu0 0
    %1240 = vmatprep.subr.bf16.mxu0 0
    %1241 = vmatpush2.bf16.msra.mxu0 0
    %1242 = vmatprep.subr.bf16.mxu0 0
    %1243 = vmatpush2.bf16.msra.mxu0 0
    %1244 = vmatprep.subr.bf16.mxu0 0
    %1245 = vmatpush2.bf16.msra.mxu0 0
    %1246 = vmatprep.subr.bf16.mxu0 0
    %1247 = vmatpush2.bf16.msra.mxu0 0
    %1248 = vmatprep.mubr.bf16.mxu0 0
    %1249 = vmatmul.mubr.bf16.gmra.mxu0 %v1214
    %v1250 = vpop.f32.mrf.mxu0
    %v1251 = vadd.f32 0.0, %v1250
    %v1252 = vpop.f32.mrf.mxu0
    %v1253 = vadd.f32 0.0, %v1252
    %v1254 = vpop.f32.mrf.mxu0
    %v1255 = vadd.f32 0.0, %v1254
    %v1256 = vpop.f32.mrf.mxu0
    %v1257 = vadd.f32 0.0, %v1256
    %1258 = vdwg.mxu0
    %1259 = vxpose.xlu0.b32.start [1/16] %v1253, 128
    %1260 = vxpose.xlu0.b32.cont [2/16] %v1257, 128
    %1261 = vxpose.xlu0.b32.cont [3/16] 0.0, 128
    %1262 = vxpose.xlu0.b32.cont [4/16] 0.0, 128
    %1263 = vxpose.xlu0.b32.cont [5/16] 0.0, 128
    %1264 = vxpose.xlu0.b32.cont [6/16] 0.0, 128
    %1265 = vxpose.xlu0.b32.cont [7/16] 0.0, 128
    %1266 = vxpose.xlu0.b32.cont [8/16] 0.0, 128
    %1267 = vxpose.xlu0.b32.cont [9/16] 0.0, 128
    %1268 = vxpose.xlu0.b32.cont [10/16] 0.0, 128
    %1269 = vxpose.xlu0.b32.cont [11/16] 0.0, 128
    %1270 = vxpose.xlu0.b32.cont [12/16] 0.0, 128
    %1271 = vxpose.xlu0.b32.cont [13/16] 0.0, 128
    %1272 = vxpose.xlu0.b32.cont [14/16] 0.0, 128
    %1273 = vxpose.xlu0.b32.cont [15/16] 0.0, 128
    %1274 = vxpose.xlu0.b32.end [16/16] 0.0, 128
    %v1275 = vpop.trf.xlu0
    %v1276 = vpop.trf.xlu0
    %v1277 = vpop.trf.xlu0
    %v1278 = vpop.trf.xlu0
    %v1279 = vpop.trf.xlu0
    %v1280 = vpop.trf.xlu0
    %v1281 = vpop.trf.xlu0
    %v1282 = vpop.trf.xlu0
    %v1283 = vpop.trf.xlu0
    %v1284 = vpop.trf.xlu0
    %v1285 = vpop.trf.xlu0
    %v1286 = vpop.trf.xlu0
    %v1287 = vpop.trf.xlu0
    %v1288 = vpop.trf.xlu0
    %v1289 = vpop.trf.xlu0
    %v1290 = vpop.trf.xlu0
    %1292 = vset.pattern.permute.xlu0 4
    %1293 = vperm.xlu0 %1292, %v1253
    %v1294 = vpop.permute.xlu0 %1293
    %1297 = vset.pattern.permute.xlu0 4
    %1298 = vperm.xlu0 %1297, %v1257
    %v1299 = vpop.permute.xlu0 %1298
    %v1301 = vlaneseq
    %v1302 = vshrl.u32 %v1301, 7
    %v1303 = vsub.s32 0, %v1302
    %v1304 = vrot.slane %v1275, %v1303
    %v1305 = vadd.f32 %v1294, %v1304
    %v1306 = vadd.f32 %v1299, %v1304
    %vm1307 = vcmp.gt.f32.partialorder %v1305, 0.0
    %vm1308 = vcmp.gt.f32.partialorder %v1306, 0.0
    %v1309 = vmul.f32 %v1305, 0.01
    %v1310 = vmul.f32 %v1306, 0.01
    %v1311 = vsel %vm1307, %v1305, %v1309
    %v1312 = vsel %vm1308, %v1306, %v1310
    %v1313 = vadd.f32 %v1311, %v91
    %v1314 = vadd.f32 %v1312, %v92
    %v1315 = vsel %vm217, %v1313, -inf
    %1316 = vmax.xlane.f32.xlu0 %v1315
    %v1317 = vpop.xlane.xlu0 %1316
    %v1318 = vsel %vm217, %v1314, -inf
    %1319 = vmax.xlane.f32.xlu0 %v1318
    %v1320 = vpop.xlane.xlu0 %1319
    %v1321 = vsub.f32 %v1313, %v1317
    %v1322 = vsub.f32 %v1314, %v1320
    %v1323 = vmul.f32 %v1321, 1.442695
    %v1324 = vpow.pop %v1323
    %v1325 = vmul.f32 %v1322, 1.442695
    %v1326 = vpow.pop %v1325
    %v1327 = vsel %vm217, %v1324, 0.0
    %1328 = vadd.xlane.f32.xlu0 %v1327
    %v1329 = vpop.xlane.xlu0 %1328
    %v1330 = vsel %vm217, %v1326, 0.0
    %1331 = vadd.xlane.f32.xlu0 %v1330
    %v1332 = vpop.xlane.xlu0 %1331
    %v1333 = vrcp.pop %v1329
    %v1334 = vrcp.pop %v1332
    %v1335 = vmul.f32 %v1324, %v1333
    %v1336 = vmul.f32 %v1326, %v1334
    %v1337 = vpack.c.bf16 %v1336, %v1335
    %v1338 = vpack.c.bf16 %v1255, %v1251
    %1339 = vset.pattern.permute.xlu0 5
    %1340 = vperm.xlu0 %1339, %v1253
    %v1341 = vpop.permute.xlu0 %1340
    %1343 = vset.pattern.permute.xlu0 5
    %1344 = vperm.xlu0 %1343, %v1257
    %v1345 = vpop.permute.xlu0 %1344
    %v1347 = vlaneseq
    %v1348 = vshrl.u32 %v1347, 7
    %v1349 = vsub.s32 1, %v1348
    %v1350 = vrot.slane %v1275, %v1349
    %v1351 = vadd.f32 %v1341, %v1350
    %v1352 = vadd.f32 %v1345, %v1350
    %vm1353 = vcmp.gt.f32.partialorder %v1351, 0.0
    %vm1354 = vcmp.gt.f32.partialorder %v1352, 0.0
    %v1355 = vmul.f32 %v1351, 0.01
    %v1356 = vmul.f32 %v1352, 0.01
    %v1357 = vsel %vm1353, %v1351, %v1355
    %v1358 = vsel %vm1354, %v1352, %v1356
    %v1359 = vadd.f32 %v1357, %v91
    %v1360 = vadd.f32 %v1358, %v92
    %v1361 = vsel %vm217, %v1359, -inf
    %1362 = vmax.xlane.f32.xlu0 %v1361
    %v1363 = vpop.xlane.xlu0 %1362
    %v1364 = vsel %vm217, %v1360, -inf
    %1365 = vmax.xlane.f32.xlu0 %v1364
    %v1366 = vpop.xlane.xlu0 %1365
    %v1367 = vsub.f32 %v1359, %v1363
    %v1368 = vsub.f32 %v1360, %v1366
    %v1369 = vmul.f32 %v1367, 1.442695
    %v1370 = vpow.pop %v1369
    %v1371 = vmul.f32 %v1368, 1.442695
    %v1372 = vpow.pop %v1371
    %v1373 = vsel %vm217, %v1370, 0.0
    %1374 = vadd.xlane.f32.xlu0 %v1373
    %v1375 = vpop.xlane.xlu0 %1374
    %v1376 = vsel %vm217, %v1372, 0.0
    %1377 = vadd.xlane.f32.xlu0 %v1376
    %v1378 = vpop.xlane.xlu0 %1377
    %v1379 = vrcp.pop %v1375
    %v1380 = vrcp.pop %v1378
    %v1381 = vmul.f32 %v1370, %v1379
    %v1382 = vmul.f32 %v1372, %v1380
    %v1383 = vpack.c.bf16 %v1382, %v1381
    %1385 = vrot.lane.b32.xlu0 %v1338, 96
    %v1386 = vpop.permute.xlu0 %1385
    %v1389 = vsel %vm217, %v1383, 0
    %1391 = vmatprep.subr.bf16.mxu0 0
    %1392 = vmatpush1.bf16.msra.mxu0 0
    %1393 = vmatprep.subr.bf16.mxu0 0
    %1394 = vmatpush1.bf16.msra.mxu0 0
    %1395 = vmatprep.subr.bf16.mxu0 0
    %1396 = vmatpush1.bf16.msra.mxu0 0
    %1397 = vmatprep.subr.bf16.mxu0 0
    %1398 = vmatpush1.bf16.msra.mxu0 0
    %1399 = vmatprep.subr.bf16.mxu0 0
    %1400 = vmatpush1.bf16.msra.mxu0 0
    %1401 = vmatprep.subr.bf16.mxu0 0
    %1402 = vmatpush1.bf16.msra.mxu0 0
    %1403 = vmatprep.subr.bf16.mxu0 0
    %1404 = vmatpush1.bf16.msra.mxu0 0
    %1405 = vmatprep.subr.bf16.mxu0 0
    %1406 = vmatpush1.bf16.msra.mxu0 %v1386
    %1407 = vmatprep.subr.bf16.mxu0 0
    %1408 = vmatpush2.bf16.msra.mxu0 0
    %1409 = vmatprep.subr.bf16.mxu0 0
    %1410 = vmatpush2.bf16.msra.mxu0 0
    %1411 = vmatprep.subr.bf16.mxu0 0
    %1412 = vmatpush2.bf16.msra.mxu0 0
    %1413 = vmatprep.subr.bf16.mxu0 0
    %1414 = vmatpush2.bf16.msra.mxu0 0
    %1415 = vmatprep.subr.bf16.mxu0 0
    %1416 = vmatpush2.bf16.msra.mxu0 0
    %1417 = vmatprep.subr.bf16.mxu0 0
    %1418 = vmatpush2.bf16.msra.mxu0 0
    %1419 = vmatprep.subr.bf16.mxu0 0
    %1420 = vmatpush2.bf16.msra.mxu0 0
    %1421 = vmatprep.subr.bf16.mxu0 0
    %1422 = vmatpush2.bf16.msra.mxu0 0
    %1423 = vmatprep.mubr.bf16.mxu0 0
    %1424 = vmatmul.mubr.bf16.gmra.mxu0 %v1389
    %v1425 = vpop.f32.mrf.mxu0
    %v1426 = vadd.f32 0.0, %v1425
    %v1427 = vpop.f32.mrf.mxu0
    %v1428 = vpop.f32.mrf.mxu0
    %v1429 = vadd.f32 0.0, %v1428
    %v1430 = vpop.f32.mrf.mxu0
    %1431 = vdwg.mxu0
    %v1433 = vsel %vm217, %v1337, 0
    %1435 = vmatprep.subr.bf16.mxu0 0
    %1436 = vmatpush1.bf16.msra.mxu0 0
    %1437 = vmatprep.subr.bf16.mxu0 0
    %1438 = vmatpush1.bf16.msra.mxu0 0
    %1439 = vmatprep.subr.bf16.mxu0 0
    %1440 = vmatpush1.bf16.msra.mxu0 0
    %1441 = vmatprep.subr.bf16.mxu0 0
    %1442 = vmatpush1.bf16.msra.mxu0 0
    %1443 = vmatprep.subr.bf16.mxu0 0
    %1444 = vmatpush1.bf16.msra.mxu0 0
    %1445 = vmatprep.subr.bf16.mxu0 0
    %1446 = vmatpush1.bf16.msra.mxu0 0
    %1447 = vmatprep.subr.bf16.mxu0 0
    %1448 = vmatpush1.bf16.msra.mxu0 0
    %1449 = vmatprep.subr.bf16.mxu0 0
    %1450 = vmatpush1.bf16.msra.mxu0 %v1338
    %1451 = vmatprep.subr.bf16.mxu0 0
    %1452 = vmatpush2.bf16.msra.mxu0 0
    %1453 = vmatprep.subr.bf16.mxu0 0
    %1454 = vmatpush2.bf16.msra.mxu0 0
    %1455 = vmatprep.subr.bf16.mxu0 0
    %1456 = vmatpush2.bf16.msra.mxu0 0
    %1457 = vmatprep.subr.bf16.mxu0 0
    %1458 = vmatpush2.bf16.msra.mxu0 0
    %1459 = vmatprep.subr.bf16.mxu0 0
    %1460 = vmatpush2.bf16.msra.mxu0 0
    %1461 = vmatprep.subr.bf16.mxu0 0
    %1462 = vmatpush2.bf16.msra.mxu0 0
    %1463 = vmatprep.subr.bf16.mxu0 0
    %1464 = vmatpush2.bf16.msra.mxu0 0
    %1465 = vmatprep.subr.bf16.mxu0 0
    %1466 = vmatpush2.bf16.msra.mxu0 0
    %1467 = vmatprep.mubr.bf16.mxu0 0
    %1468 = vmatmul.mubr.bf16.gmra.mxu0 %v1433
    %v1469 = vpop.f32.mrf.mxu0
    %v1470 = vadd.f32 %v1426, %v1469
    %v1471 = vpop.f32.mrf.mxu0
    %v1472 = vpop.f32.mrf.mxu0
    %v1473 = vadd.f32 %v1429, %v1472
    %v1474 = vpop.f32.mrf.mxu0
    %1475 = vdwg.mxu0
    %1476 = vset.pattern.permute.xlu0 6
    %1477 = vperm.xlu0 %1476, %v1253
    %v1478 = vpop.permute.xlu0 %1477
    %1480 = vset.pattern.permute.xlu0 6
    %1481 = vperm.xlu0 %1480, %v1257
    %v1482 = vpop.permute.xlu0 %1481
    %v1484 = vlaneseq
    %v1485 = vshrl.u32 %v1484, 7
    %v1486 = vsub.s32 2, %v1485
    %v1487 = vrot.slane %v1275, %v1486
    %v1488 = vadd.f32 %v1478, %v1487
    %v1489 = vadd.f32 %v1482, %v1487
    %vm1490 = vcmp.gt.f32.partialorder %v1488, 0.0
    %vm1491 = vcmp.gt.f32.partialorder %v1489, 0.0
    %v1492 = vmul.f32 %v1488, 0.01
    %v1493 = vmul.f32 %v1489, 0.01
    %v1494 = vsel %vm1490, %v1488, %v1492
    %v1495 = vsel %vm1491, %v1489, %v1493
    %v1496 = vadd.f32 %v1494, %v91
    %v1497 = vadd.f32 %v1495, %v92
    %v1498 = vsel %vm217, %v1496, -inf
    %1499 = vmax.xlane.f32.xlu0 %v1498
    %v1500 = vpop.xlane.xlu0 %1499
    %v1501 = vsel %vm217, %v1497, -inf
    %1502 = vmax.xlane.f32.xlu0 %v1501
    %v1503 = vpop.xlane.xlu0 %1502
    %v1504 = vsub.f32 %v1496, %v1500
    %v1505 = vsub.f32 %v1497, %v1503
    %v1506 = vmul.f32 %v1504, 1.442695
    %v1507 = vpow.pop %v1506
    %v1508 = vmul.f32 %v1505, 1.442695
    %v1509 = vpow.pop %v1508
    %v1510 = vsel %vm217, %v1507, 0.0
    %1511 = vadd.xlane.f32.xlu0 %v1510
    %v1512 = vpop.xlane.xlu0 %1511
    %v1513 = vsel %vm217, %v1509, 0.0
    %1514 = vadd.xlane.f32.xlu0 %v1513
    %v1515 = vpop.xlane.xlu0 %1514
    %v1516 = vrcp.pop %v1512
    %v1517 = vrcp.pop %v1515
    %v1518 = vmul.f32 %v1507, %v1516
    %v1519 = vmul.f32 %v1509, %v1517
    %v1520 = vpack.c.bf16 %v1519, %v1518
    %1521 = vrot.lane.b32.xlu0 %v1338, 64
    %v1522 = vpop.permute.xlu0 %1521
    %v1525 = vsel %vm217, %v1520, 0
    %1527 = vmatprep.subr.bf16.mxu0 0
    %1528 = vmatpush1.bf16.msra.mxu0 0
    %1529 = vmatprep.subr.bf16.mxu0 0
    %1530 = vmatpush1.bf16.msra.mxu0 0
    %1531 = vmatprep.subr.bf16.mxu0 0
    %1532 = vmatpush1.bf16.msra.mxu0 0
    %1533 = vmatprep.subr.bf16.mxu0 0
    %1534 = vmatpush1.bf16.msra.mxu0 0
    %1535 = vmatprep.subr.bf16.mxu0 0
    %1536 = vmatpush1.bf16.msra.mxu0 0
    %1537 = vmatprep.subr.bf16.mxu0 0
    %1538 = vmatpush1.bf16.msra.mxu0 0
    %1539 = vmatprep.subr.bf16.mxu0 0
    %1540 = vmatpush1.bf16.msra.mxu0 0
    %1541 = vmatprep.subr.bf16.mxu0 0
    %1542 = vmatpush1.bf16.msra.mxu0 %v1522
    %1543 = vmatprep.subr.bf16.mxu0 0
    %1544 = vmatpush2.bf16.msra.mxu0 0
    %1545 = vmatprep.subr.bf16.mxu0 0
    %1546 = vmatpush2.bf16.msra.mxu0 0
    %1547 = vmatprep.subr.bf16.mxu0 0
    %1548 = vmatpush2.bf16.msra.mxu0 0
    %1549 = vmatprep.subr.bf16.mxu0 0
    %1550 = vmatpush2.bf16.msra.mxu0 0
    %1551 = vmatprep.subr.bf16.mxu0 0
    %1552 = vmatpush2.bf16.msra.mxu0 0
    %1553 = vmatprep.subr.bf16.mxu0 0
    %1554 = vmatpush2.bf16.msra.mxu0 0
    %1555 = vmatprep.subr.bf16.mxu0 0
    %1556 = vmatpush2.bf16.msra.mxu0 0
    %1557 = vmatprep.subr.bf16.mxu0 0
    %1558 = vmatpush2.bf16.msra.mxu0 0
    %1559 = vmatprep.mubr.bf16.mxu0 0
    %1560 = vmatmul.mubr.bf16.gmra.mxu0 %v1525
    %v1561 = vpop.f32.mrf.mxu0
    %v1562 = vadd.f32 0.0, %v1561
    %v1563 = vpop.f32.mrf.mxu0
    %v1564 = vpop.f32.mrf.mxu0
    %v1565 = vadd.f32 0.0, %v1564
    %v1566 = vpop.f32.mrf.mxu0
    %1567 = vdwg.mxu0
    %v1568 = vadd.f32 %v1470, %v1562
    %v1569 = vadd.f32 %v1473, %v1565
    %1570 = vset.pattern.permute.xlu0 7
    %1571 = vperm.xlu0 %1570, %v1253
    %v1572 = vpop.permute.xlu0 %1571
    %1574 = vset.pattern.permute.xlu0 7
    %1575 = vperm.xlu0 %1574, %v1257
    %v1576 = vpop.permute.xlu0 %1575
    %v1578 = vlaneseq
    %v1579 = vshrl.u32 %v1578, 7
    %v1580 = vsub.s32 3, %v1579
    %v1581 = vrot.slane %v1275, %v1580
    %v1582 = vadd.f32 %v1572, %v1581
    %v1583 = vadd.f32 %v1576, %v1581
    %vm1584 = vcmp.gt.f32.partialorder %v1582, 0.0
    %vm1585 = vcmp.gt.f32.partialorder %v1583, 0.0
    %v1586 = vmul.f32 %v1582, 0.01
    %v1587 = vmul.f32 %v1583, 0.01
    %v1588 = vsel %vm1584, %v1582, %v1586
    %v1589 = vsel %vm1585, %v1583, %v1587
    %v1590 = vadd.f32 %v1588, %v91
    %v1591 = vadd.f32 %v1589, %v92
    %v1592 = vsel %vm217, %v1590, -inf
    %1593 = vmax.xlane.f32.xlu0 %v1592
    %v1594 = vpop.xlane.xlu0 %1593
    %v1595 = vsel %vm217, %v1591, -inf
    %1596 = vmax.xlane.f32.xlu0 %v1595
    %v1597 = vpop.xlane.xlu0 %1596
    %v1598 = vsub.f32 %v1590, %v1594
    %v1599 = vsub.f32 %v1591, %v1597
    %v1600 = vmul.f32 %v1598, 1.442695
    %v1601 = vpow.pop %v1600
    %v1602 = vmul.f32 %v1599, 1.442695
    %v1603 = vpow.pop %v1602
    %v1604 = vsel %vm217, %v1601, 0.0
    %1605 = vadd.xlane.f32.xlu0 %v1604
    %v1606 = vpop.xlane.xlu0 %1605
    %v1607 = vsel %vm217, %v1603, 0.0
    %1608 = vadd.xlane.f32.xlu0 %v1607
    %v1609 = vpop.xlane.xlu0 %1608
    %v1610 = vrcp.pop %v1606
    %v1611 = vrcp.pop %v1609
    %v1612 = vmul.f32 %v1601, %v1610
    %v1613 = vmul.f32 %v1603, %v1611
    %v1614 = vpack.c.bf16 %v1613, %v1612
    %1615 = vrot.lane.b32.xlu0 %v1338, 32
    %v1616 = vpop.permute.xlu0 %1615
    %v1619 = vsel %vm217, %v1614, 0
    %1621 = vmatprep.subr.bf16.mxu0 0
    %1622 = vmatpush1.bf16.msra.mxu0 0
    %1623 = vmatprep.subr.bf16.mxu0 0
    %1624 = vmatpush1.bf16.msra.mxu0 0
    %1625 = vmatprep.subr.bf16.mxu0 0
    %1626 = vmatpush1.bf16.msra.mxu0 0
    %1627 = vmatprep.subr.bf16.mxu0 0
    %1628 = vmatpush1.bf16.msra.mxu0 0
    %1629 = vmatprep.subr.bf16.mxu0 0
    %1630 = vmatpush1.bf16.msra.mxu0 0
    %1631 = vmatprep.subr.bf16.mxu0 0
    %1632 = vmatpush1.bf16.msra.mxu0 0
    %1633 = vmatprep.subr.bf16.mxu0 0
    %1634 = vmatpush1.bf16.msra.mxu0 0
    %1635 = vmatprep.subr.bf16.mxu0 0
    %1636 = vmatpush1.bf16.msra.mxu0 %v1616
    %1637 = vmatprep.subr.bf16.mxu0 0
    %1638 = vmatpush2.bf16.msra.mxu0 0
    %1639 = vmatprep.subr.bf16.mxu0 0
    %1640 = vmatpush2.bf16.msra.mxu0 0
    %1641 = vmatprep.subr.bf16.mxu0 0
    %1642 = vmatpush2.bf16.msra.mxu0 0
    %1643 = vmatprep.subr.bf16.mxu0 0
    %1644 = vmatpush2.bf16.msra.mxu0 0
    %1645 = vmatprep.subr.bf16.mxu0 0
    %1646 = vmatpush2.bf16.msra.mxu0 0
    %1647 = vmatprep.subr.bf16.mxu0 0
    %1648 = vmatpush2.bf16.msra.mxu0 0
    %1649 = vmatprep.subr.bf16.mxu0 0
    %1650 = vmatpush2.bf16.msra.mxu0 0
    %1651 = vmatprep.subr.bf16.mxu0 0
    %1652 = vmatpush2.bf16.msra.mxu0 0
    %1653 = vmatprep.mubr.bf16.mxu0 0
    %1654 = vmatmul.mubr.bf16.gmra.mxu0 %v1619
    %v1655 = vpop.f32.mrf.mxu0
    %v1656 = vadd.f32 0.0, %v1655
    %v1657 = vpop.f32.mrf.mxu0
    %v1658 = vpop.f32.mrf.mxu0
    %v1659 = vadd.f32 0.0, %v1658
    %v1660 = vpop.f32.mrf.mxu0
    %1661 = vdwg.mxu0
    %v1662 = vadd.f32 %v1568, %v1656
    %v1663 = vadd.f32 %v1569, %v1659
    %v1664 = vmul.f32 %v1662, 0.25
    %v1665 = vmul.f32 %v1663, 0.25
    %v1666 = vadd.f32 %v1253, %v1054
    %v1667 = vadd.f32 %v1257, %v1054
    %v1668 = vpack.c.bf16 %v1665, %v1664
    %v1670 = vsel %vm594, %v1668, 0
    %1672 = vmatprep.subr.bf16.mxu0 0
    %1673 = vmatpush1.bf16.msra.mxu0 0
    %1674 = vmatprep.subr.bf16.mxu0 0
    %1675 = vmatpush1.bf16.msra.mxu0 0
    %1676 = vmatprep.subr.bf16.mxu0 0
    %1677 = vmatpush1.bf16.msra.mxu0 0
    %1678 = vmatprep.subr.bf16.mxu0 0
    %1679 = vmatpush1.bf16.msra.mxu0 0
    %1680 = vmatprep.subr.bf16.mxu0 0
    %1681 = vmatpush1.bf16.msra.mxu0 0
    %1682 = vmatprep.subr.bf16.mxu0 0
    %1683 = vmatpush1.bf16.msra.mxu0 0
    %1684 = vmatprep.subr.bf16.mxu0 0
    %1685 = vmatpush1.bf16.msra.mxu0 %v1072
    %1686 = vmatprep.subr.bf16.mxu0 0
    %1687 = vmatpush1.bf16.msra.mxu0 %v1071
    %1688 = vmatprep.subr.bf16.mxu0 0
    %1689 = vmatpush2.bf16.msra.mxu0 0
    %1690 = vmatprep.subr.bf16.mxu0 0
    %1691 = vmatpush2.bf16.msra.mxu0 0
    %1692 = vmatprep.subr.bf16.mxu0 0
    %1693 = vmatpush2.bf16.msra.mxu0 0
    %1694 = vmatprep.subr.bf16.mxu0 0
    %1695 = vmatpush2.bf16.msra.mxu0 0
    %1696 = vmatprep.subr.bf16.mxu0 0
    %1697 = vmatpush2.bf16.msra.mxu0 0
    %1698 = vmatprep.subr.bf16.mxu0 0
    %1699 = vmatpush2.bf16.msra.mxu0 0
    %1700 = vmatprep.subr.bf16.mxu0 0
    %1701 = vmatpush2.bf16.msra.mxu0 0
    %1702 = vmatprep.subr.bf16.mxu0 0
    %1703 = vmatpush2.bf16.msra.mxu0 0
    %1704 = vmatprep.mubr.bf16.mxu0 0
    %1705 = vmatmul.mubr.bf16.gmra.mxu0 %v1670
    %v1706 = vpop.f32.mrf.mxu0
    %v1707 = vadd.f32 %v1062, %v1706
    %v1708 = vpop.f32.mrf.mxu0
    %v1709 = vpop.f32.mrf.mxu0
    %v1710 = vadd.f32 %v1062, %v1709
    %v1711 = vpop.f32.mrf.mxu0
    %1712 = vdwg.mxu0
    %1715 = vrot.lane.b32.xlu0 %v1666, 120
    %v1716 = vpop.permute.xlu0 %1715
    %1717 = vrot.lane.b32.xlu0 %v1667, 120
    %v1718 = vpop.permute.xlu0 %1717
    %v1721 = vadd.f32 %v1707, %v1716
    %v1722 = vadd.f32 %v1710, %v1718
    %v1723 = vxor.u32 %v1721, 2147483648
    %v1724 = vxor.u32 %v1722, 2147483648
    %v1725 = vmul.f32 %v1723, 1.442695
    %v1726 = vpow.pop %v1725
    %v1727 = vmul.f32 %v1724, 1.442695
    %v1728 = vpow.pop %v1727
    %v1729 = vadd.f32 %v1726, 1.0
    %v1730 = vadd.f32 %v1728, 1.0
    %v1731 = vrcp.pop %v1729
    %v1732 = vmul.f32 1.0, %v1731
    %v1733 = vrcp.pop %v1730
    %v1734 = vmul.f32 1.0, %v1733
    %1735 = vrot.lane.b32.xlu0 %v1666, 56
    %v1736 = vpop.permute.xlu0 %1735
    %1737 = vrot.lane.b32.xlu0 %v1667, 56
    %v1738 = vpop.permute.xlu0 %1737
    %v1741 = vmul.f32 %v1732, %v1736
    %v1742 = vmul.f32 %v1734, %v1738
    %1745 = vrot.lane.b32.xlu0 %v1741, 64
    %v1746 = vpop.permute.xlu0 %1745
    %1747 = vrot.lane.b32.xlu0 %v1742, 64
    %v1748 = vpop.permute.xlu0 %1747
    %v1751 = vadd.f32 %v1707, %v1746
    %v1752 = vadd.f32 %v1710, %v1748
    %v1753 = vtanh.pop %v1751
    %v1754 = vtanh.pop %v1752
    %v1755 = vsub.f32 1.0, %v1732
    %v1756 = vsub.f32 1.0, %v1734
    %1759 = vrot.lane.b32.xlu0 %v1753, 96
    %v1760 = vpop.permute.xlu0 %1759
    %1761 = vrot.lane.b32.xlu0 %v1754, 96
    %v1762 = vpop.permute.xlu0 %1761
    %v1765 = vmul.f32 %v1755, %v1760
    %v1766 = vmul.f32 %v1756, %v1762
    %v1767 = vmul.f32 %v1732, %v1183
    %v1768 = vmul.f32 %v1734, %v1184
    %v1769 = vadd.f32 %v1765, %v1767
    %v1770 = vadd.f32 %v1766, %v1768
    %v1771 = vpack.c.bf16 %v1770, %v1769
    %v1772 = vld [vmem:[#allocation7] sm:$0xff]
    %v1773 = vld [vmem:[#allocation7 + $0x8] sm:$0xff]
    %v1774 = vld [vmem:[#allocation7 + $0x10] sm:$0xff]
    %v1775 = vld [vmem:[#allocation7 + $0x18] sm:$0xff]
    %1777 = vrot.lane.b32.xlu0 %v1771, 96
    %v1778 = vpop.permute.xlu0 %1777
    %v1783 = vunpack.c.l.b16 %v1772
    %v1784 = vunpack.c.h.b16 %v1772
    %v1785 = vunpack.c.l.b16 %v1773
    %v1786 = vunpack.c.h.b16 %v1773
    %v1787 = vunpack.c.l.b16 %v1774
    %v1788 = vunpack.c.h.b16 %v1774
    %v1789 = vunpack.c.l.b16 %v1775
    %v1790 = vunpack.c.h.b16 %v1775
    %v1791 = vpack.c.b16 %v1785, %v1783
    %v1792 = vpack.c.b16 %v1786, %v1784
    %v1793 = vpack.c.b16 %v1789, %v1787
    %v1794 = vpack.c.b16 %v1790, %v1788
    %v1800 = vsel %vm594, %v1778, 0
    %1802 = vmatprep.subr.bf16.mxu0 0
    %1803 = vmatpush1.bf16.msra.mxu0 0
    %1804 = vmatprep.subr.bf16.mxu0 0
    %1805 = vmatpush1.bf16.msra.mxu0 0
    %1806 = vmatprep.subr.bf16.mxu0 0
    %1807 = vmatpush1.bf16.msra.mxu0 0
    %1808 = vmatprep.subr.bf16.mxu0 0
    %1809 = vmatpush1.bf16.msra.mxu0 0
    %1810 = vmatprep.subr.bf16.mxu0 0
    %1811 = vmatpush1.bf16.msra.mxu0 0
    %1812 = vmatprep.subr.bf16.mxu0 0
    %1813 = vmatpush1.bf16.msra.mxu0 0
    %1814 = vmatprep.subr.bf16.mxu0 %v1794
    %1815 = vmatpush1.bf16.msra.mxu0 %v1793
    %1816 = vmatprep.subr.bf16.mxu0 %v1792
    %1817 = vmatpush1.bf16.msra.mxu0 %v1791
    %1818 = vmatprep.subr.bf16.mxu0 0
    %1819 = vmatpush2.bf16.msra.mxu0 0
    %1820 = vmatprep.subr.bf16.mxu0 0
    %1821 = vmatpush2.bf16.msra.mxu0 0
    %1822 = vmatprep.subr.bf16.mxu0 0
    %1823 = vmatpush2.bf16.msra.mxu0 0
    %1824 = vmatprep.subr.bf16.mxu0 0
    %1825 = vmatpush2.bf16.msra.mxu0 0
    %1826 = vmatprep.subr.bf16.mxu0 0
    %1827 = vmatpush2.bf16.msra.mxu0 0
    %1828 = vmatprep.subr.bf16.mxu0 0
    %1829 = vmatpush2.bf16.msra.mxu0 0
    %1830 = vmatprep.subr.bf16.mxu0 0
    %1831 = vmatpush2.bf16.msra.mxu0 0
    %1832 = vmatprep.subr.bf16.mxu0 0
    %1833 = vmatpush2.bf16.msra.mxu0 0
    %1834 = vmatprep.mubr.bf16.mxu0 0
    %1835 = vmatmul.mubr.bf16.gmra.mxu0 %v1800
    %v1836 = vpop.f32.mrf.mxu0
    %v1837 = vadd.f32 0.0, %v1836
    %v1838 = vpop.f32.mrf.mxu0
    %v1839 = vadd.f32 0.0, %v1838
    %v1840 = vpop.f32.mrf.mxu0
    %v1841 = vadd.f32 0.0, %v1840
    %v1842 = vpop.f32.mrf.mxu0
    %v1843 = vadd.f32 0.0, %v1842
    %1844 = vdwg.mxu0
    %1847 = vrot.lane.b32.xlu0 %v1837, 96
    %v1848 = vpop.permute.xlu0 %1847
    %1849 = vrot.lane.b32.xlu0 %v1841, 96
    %v1850 = vpop.permute.xlu0 %1849
    %1853 = vxpose.xlu0.b32.start [1/16] %v1848, 128
    %1854 = vxpose.xlu0.b32.cont [2/16] %v1850, 128
    %1855 = vxpose.xlu0.b32.cont [3/16] 0.0, 128
    %1856 = vxpose.xlu0.b32.cont [4/16] 0.0, 128
    %1857 = vxpose.xlu0.b32.cont [5/16] 0.0, 128
    %1858 = vxpose.xlu0.b32.cont [6/16] 0.0, 128
    %1859 = vxpose.xlu0.b32.cont [7/16] 0.0, 128
    %1860 = vxpose.xlu0.b32.cont [8/16] 0.0, 128
    %1861 = vxpose.xlu0.b32.cont [9/16] 0.0, 128
    %1862 = vxpose.xlu0.b32.cont [10/16] 0.0, 128
    %1863 = vxpose.xlu0.b32.cont [11/16] 0.0, 128
    %1864 = vxpose.xlu0.b32.cont [12/16] 0.0, 128
    %1865 = vxpose.xlu0.b32.cont [13/16] 0.0, 128
    %1866 = vxpose.xlu0.b32.cont [14/16] 0.0, 128
    %1867 = vxpose.xlu0.b32.cont [15/16] 0.0, 128
    %1868 = vxpose.xlu0.b32.end [16/16] 0.0, 128
    %v1869 = vpop.trf.xlu0
    %v1870 = vpop.trf.xlu0
    %v1871 = vpop.trf.xlu0
    %v1872 = vpop.trf.xlu0
    %v1873 = vpop.trf.xlu0
    %v1874 = vpop.trf.xlu0
    %v1875 = vpop.trf.xlu0
    %v1876 = vpop.trf.xlu0
    %v1877 = vpop.trf.xlu0
    %v1878 = vpop.trf.xlu0
    %v1879 = vpop.trf.xlu0
    %v1880 = vpop.trf.xlu0
    %v1881 = vpop.trf.xlu0
    %v1882 = vpop.trf.xlu0
    %v1883 = vpop.trf.xlu0
    %v1884 = vpop.trf.xlu0
    %1885 = vset.pattern.permute.xlu0 33
    %1886 = vperm.xlu0 %1885, %v1837
    %v1887 = vpop.permute.xlu0 %1886
    %1889 = vset.pattern.permute.xlu0 33
    %1890 = vperm.xlu0 %1889, %v1841
    %v1891 = vpop.permute.xlu0 %1890
    %v1893 = vlaneseq
    %v1894 = vshrl.u32 %v1893, 7
    %v1895 = vsub.s32 0, %v1894
    %v1896 = vrot.slane %v1869, %v1895
    %v1897 = vadd.f32 %v1887, %v1896
    %v1898 = vadd.f32 %v1891, %v1896
    %vm1899 = vcmp.gt.f32.partialorder %v1897, 0.0
    %vm1900 = vcmp.gt.f32.partialorder %v1898, 0.0
    %v1901 = vmul.f32 %v1897, 0.01
    %v1902 = vmul.f32 %v1898, 0.01
    %v1903 = vsel %vm1899, %v1897, %v1901
    %v1904 = vsel %vm1900, %v1898, %v1902
    %v1905 = vadd.f32 %v1903, %v91
    %v1906 = vadd.f32 %v1904, %v92
    %v1907 = vsel %vm217, %v1905, -inf
    %1908 = vmax.xlane.f32.xlu0 %v1907
    %v1909 = vpop.xlane.xlu0 %1908
    %v1910 = vsel %vm217, %v1906, -inf
    %1911 = vmax.xlane.f32.xlu0 %v1910
    %v1912 = vpop.xlane.xlu0 %1911
    %v1913 = vsub.f32 %v1905, %v1909
    %v1914 = vsub.f32 %v1906, %v1912
    %v1915 = vmul.f32 %v1913, 1.442695
    %v1916 = vpow.pop %v1915
    %v1917 = vmul.f32 %v1914, 1.442695
    %v1918 = vpow.pop %v1917
    %v1919 = vsel %vm217, %v1916, 0.0
    %1920 = vadd.xlane.f32.xlu0 %v1919
    %v1921 = vpop.xlane.xlu0 %1920
    %v1922 = vsel %vm217, %v1918, 0.0
    %1923 = vadd.xlane.f32.xlu0 %v1922
    %v1924 = vpop.xlane.xlu0 %1923
    %v1925 = vrcp.pop %v1921
    %v1926 = vrcp.pop %v1924
    %v1927 = vmul.f32 %v1916, %v1925
    %v1928 = vmul.f32 %v1918, %v1926
    %v1929 = vpack.c.bf16 %v1928, %v1927
    %v1930 = vpack.c.bf16 %v1841, %v1837
    %v1932 = vsel %vm217, %v1929, 0
    %1934 = vmatprep.subr.bf16.mxu0 0
    %1935 = vmatpush1.bf16.msra.mxu0 0
    %1936 = vmatprep.subr.bf16.mxu0 0
    %1937 = vmatpush1.bf16.msra.mxu0 0
    %1938 = vmatprep.subr.bf16.mxu0 0
    %1939 = vmatpush1.bf16.msra.mxu0 0
    %1940 = vmatprep.subr.bf16.mxu0 0
    %1941 = vmatpush1.bf16.msra.mxu0 0
    %1942 = vmatprep.subr.bf16.mxu0 0
    %1943 = vmatpush1.bf16.msra.mxu0 0
    %1944 = vmatprep.subr.bf16.mxu0 0
    %1945 = vmatpush1.bf16.msra.mxu0 0
    %1946 = vmatprep.subr.bf16.mxu0 0
    %1947 = vmatpush1.bf16.msra.mxu0 0
    %1948 = vmatprep.subr.bf16.mxu0 0
    %1949 = vmatpush1.bf16.msra.mxu0 %v1930
    %1950 = vmatprep.subr.bf16.mxu0 0
    %1951 = vmatpush2.bf16.msra.mxu0 0
    %1952 = vmatprep.subr.bf16.mxu0 0
    %1953 = vmatpush2.bf16.msra.mxu0 0
    %1954 = vmatprep.subr.bf16.mxu0 0
    %1955 = vmatpush2.bf16.msra.mxu0 0
    %1956 = vmatprep.subr.bf16.mxu0 0
    %1957 = vmatpush2.bf16.msra.mxu0 0
    %1958 = vmatprep.subr.bf16.mxu0 0
    %1959 = vmatpush2.bf16.msra.mxu0 0
    %1960 = vmatprep.subr.bf16.mxu0 0
    %1961 = vmatpush2.bf16.msra.mxu0 0
    %1962 = vmatprep.subr.bf16.mxu0 0
    %1963 = vmatpush2.bf16.msra.mxu0 0
    %1964 = vmatprep.subr.bf16.mxu0 0
    %1965 = vmatpush2.bf16.msra.mxu0 0
    %1966 = vmatprep.mubr.bf16.mxu0 0
    %1967 = vmatmul.mubr.bf16.gmra.mxu0 %v1932
    %v1968 = vpop.f32.mrf.mxu0
    %v1969 = vadd.f32 0.0, %v1968
    %v1970 = vpop.f32.mrf.mxu0
    %v1971 = vpop.f32.mrf.mxu0
    %v1972 = vadd.f32 0.0, %v1971
    %v1973 = vpop.f32.mrf.mxu0
    %1974 = vdwg.mxu0
    %1975 = vrot.lane.b32.xlu0 %v1051, 34
    %v1976 = vpop.permute.xlu0 %1975
    %v1978 = vadd.f32 %v1837, %v1976
    %v1979 = vadd.f32 %v1839, %v1976
    %v1980 = vadd.f32 %v1841, %v1976
    %v1981 = vadd.f32 %v1843, %v1976
    %v1982 = vpack.c.bf16 %v1972, %v1969
    %v1984 = vsel %vm594, %v1982, 0
    %1986 = vmatprep.subr.bf16.mxu0 0
    %1987 = vmatpush1.bf16.msra.mxu0 0
    %1988 = vmatprep.subr.bf16.mxu0 0
    %1989 = vmatpush1.bf16.msra.mxu0 0
    %1990 = vmatprep.subr.bf16.mxu0 0
    %1991 = vmatpush1.bf16.msra.mxu0 0
    %1992 = vmatprep.subr.bf16.mxu0 0
    %1993 = vmatpush1.bf16.msra.mxu0 0
    %1994 = vmatprep.subr.bf16.mxu0 0
    %1995 = vmatpush1.bf16.msra.mxu0 0
    %1996 = vmatprep.subr.bf16.mxu0 0
    %1997 = vmatpush1.bf16.msra.mxu0 0
    %1998 = vmatprep.subr.bf16.mxu0 0
    %1999 = vmatpush1.bf16.msra.mxu0 %v1072
    %2000 = vmatprep.subr.bf16.mxu0 0
    %2001 = vmatpush1.bf16.msra.mxu0 %v1071
    %2002 = vmatprep.subr.bf16.mxu0 0
    %2003 = vmatpush2.bf16.msra.mxu0 0
    %2004 = vmatprep.subr.bf16.mxu0 0
    %2005 = vmatpush2.bf16.msra.mxu0 0
    %2006 = vmatprep.subr.bf16.mxu0 0
    %2007 = vmatpush2.bf16.msra.mxu0 0
    %2008 = vmatprep.subr.bf16.mxu0 0
    %2009 = vmatpush2.bf16.msra.mxu0 0
    %2010 = vmatprep.subr.bf16.mxu0 0
    %2011 = vmatpush2.bf16.msra.mxu0 0
    %2012 = vmatprep.subr.bf16.mxu0 0
    %2013 = vmatpush2.bf16.msra.mxu0 0
    %2014 = vmatprep.subr.bf16.mxu0 0
    %2015 = vmatpush2.bf16.msra.mxu0 0
    %2016 = vmatprep.subr.bf16.mxu0 0
    %2017 = vmatpush2.bf16.msra.mxu0 0
    %2018 = vmatprep.mubr.bf16.mxu0 0
    %2019 = vmatmul.mubr.bf16.gmra.mxu0 %v1984
    %v2020 = vpop.f32.mrf.mxu0
    %v2021 = vadd.f32 %v1062, %v2020
    %v2022 = vpop.f32.mrf.mxu0
    %v2023 = vpop.f32.mrf.mxu0
    %v2024 = vadd.f32 %v1062, %v2023
    %v2025 = vpop.f32.mrf.mxu0
    %2026 = vdwg.mxu0
    %2029 = vrot.lane.b32.xlu0 %v1978, 94
    %v2030 = vpop.permute.xlu0 %2029
    %2031 = vrot.lane.b32.xlu0 %v1980, 94
    %v2032 = vpop.permute.xlu0 %2031
    %v2035 = vadd.f32 %v2021, %v2030
    %v2036 = vadd.f32 %v2024, %v2032
    %v2037 = vxor.u32 %v2035, 2147483648
    %v2038 = vxor.u32 %v2036, 2147483648
    %v2039 = vmul.f32 %v2037, 1.442695
    %v2040 = vpow.pop %v2039
    %v2041 = vmul.f32 %v2038, 1.442695
    %v2042 = vpow.pop %v2041
    %v2043 = vadd.f32 %v2040, 1.0
    %v2044 = vadd.f32 %v2042, 1.0
    %v2045 = vrcp.pop %v2043
    %v2046 = vmul.f32 1.0, %v2045
    %v2047 = vrcp.pop %v2044
    %v2048 = vmul.f32 1.0, %v2047
    %2051 = vrot.lane.b32.xlu0 %v1978, 30
    %v2052 = vpop.permute.xlu0 %2051
    %2053 = vrot.lane.b32.xlu0 %v1979, 30
    %v2054 = vpop.permute.xlu0 %2053
    %2055 = vrot.lane.b32.xlu0 %v1980, 30
    %v2056 = vpop.permute.xlu0 %2055
    %2057 = vrot.lane.b32.xlu0 %v1981, 30
    %v2058 = vpop.permute.xlu0 %2057
    %vm2059 = vcmask 244736
    %v2060 = vsel %vm2059, %v2052, %v2054
    %v2061 = vsel %vm2059, %v2056, %v2058
    %v2064 = vmul.f32 %v2046, %v2060
    %v2065 = vmul.f32 %v2048, %v2061
    %2068 = vrot.lane.b32.xlu0 %v2064, 64
    %v2069 = vpop.permute.xlu0 %2068
    %2070 = vrot.lane.b32.xlu0 %v2065, 64
    %v2071 = vpop.permute.xlu0 %2070
    %v2074 = vadd.f32 %v2021, %v2069
    %v2075 = vadd.f32 %v2024, %v2071
    %v2076 = vtanh.pop %v2074
    %v2077 = vtanh.pop %v2075
    %v2078 = vsub.f32 1.0, %v2046
    %v2079 = vsub.f32 1.0, %v2048
    %2082 = vrot.lane.b32.xlu0 %v2076, 96
    %v2083 = vpop.permute.xlu0 %2082
    %2084 = vrot.lane.b32.xlu0 %v2077, 96
    %v2085 = vpop.permute.xlu0 %2084
    %v2088 = vmul.f32 %v2078, %v2083
    %v2089 = vmul.f32 %v2079, %v2085
    %v2090 = vmul.f32 %v2046, %v1769
    %v2091 = vmul.f32 %v2048, %v1770
    %v2092 = vadd.f32 %v2088, %v2090
    %v2093 = vadd.f32 %v2089, %v2091
    %v2094 = vpack.c.bf16 %v2093, %v2092
    %v2095 = vld [vmem:[%s8] sm:$0xf]
    %v2096 = vld [vmem:[%s8 + $0x4] sm:$0xf]
    %v2097 = vld [vmem:[%s8 + $0x8] sm:$0xf]
    %v2098 = vld [vmem:[%s8 + $0xc] sm:$0xf]
    %v2099 = vld [vmem:[#allocation2] sm:$0x1]
    %v2101 = vlaneseq
    %v2102 = vshrl.u32 %v2101, 7
    %v2103 = vsub.s32 0, %v2102
    %v2104 = vrot.slane %v2099, %v2103
    %2107 = vrot.lane.b32.xlu0 %v2094, 96
    %v2108 = vpop.permute.xlu0 %2107
    %v2113 = vunpack.c.l.b16 %v2095
    %v2114 = vunpack.c.l.b16 %v2096
    %v2115 = vunpack.c.l.b16 %v2097
    %v2116 = vunpack.c.l.b16 %v2098
    %v2117 = vpack.c.b16 %v2114, %v2113
    %v2118 = vpack.c.b16 %v2116, %v2115
    %v2122 = vsel %vm594, %v2108, 0
    %2124 = vmatprep.subr.bf16.mxu0 0
    %2125 = vmatpush1.bf16.msra.mxu0 0
    %2126 = vmatprep.subr.bf16.mxu0 0
    %2127 = vmatpush1.bf16.msra.mxu0 0
    %2128 = vmatprep.subr.bf16.mxu0 0
    %2129 = vmatpush1.bf16.msra.mxu0 0
    %2130 = vmatprep.subr.bf16.mxu0 0
    %2131 = vmatpush1.bf16.msra.mxu0 0
    %2132 = vmatprep.subr.bf16.mxu0 0
    %2133 = vmatpush1.bf16.msra.mxu0 0
    %2134 = vmatprep.subr.bf16.mxu0 0
    %2135 = vmatpush1.bf16.msra.mxu0 0
    %2136 = vmatprep.subr.bf16.mxu0 0
    %2137 = vmatpush1.bf16.msra.mxu0 %v2118
    %2138 = vmatprep.subr.bf16.mxu0 0
    %2139 = vmatpush1.bf16.msra.mxu0 %v2117
    %2140 = vmatprep.subr.bf16.mxu0 0
    %2141 = vmatpush2.bf16.msra.mxu0 0
    %2142 = vmatprep.subr.bf16.mxu0 0
    %2143 = vmatpush2.bf16.msra.mxu0 0
    %2144 = vmatprep.subr.bf16.mxu0 0
    %2145 = vmatpush2.bf16.msra.mxu0 0
    %2146 = vmatprep.subr.bf16.mxu0 0
    %2147 = vmatpush2.bf16.msra.mxu0 0
    %2148 = vmatprep.subr.bf16.mxu0 0
    %2149 = vmatpush2.bf16.msra.mxu0 0
    %2150 = vmatprep.subr.bf16.mxu0 0
    %2151 = vmatpush2.bf16.msra.mxu0 0
    %2152 = vmatprep.subr.bf16.mxu0 0
    %2153 = vmatpush2.bf16.msra.mxu0 0
    %2154 = vmatprep.subr.bf16.mxu0 0
    %2155 = vmatpush2.bf16.msra.mxu0 0
    %2156 = vmatprep.mubr.bf16.mxu0 0
    %2157 = vmatmul.mubr.bf16.gmra.mxu0 %v2122
    %v2158 = vpop.f32.mrf.mxu0
    %v2159 = vadd.f32 %v2104, %v2158
    %v2160 = vpop.f32.mrf.mxu0
    %v2161 = vpop.f32.mrf.mxu0
    %v2162 = vadd.f32 %v2104, %v2161
    %v2163 = vpop.f32.mrf.mxu0
    %2164 = vdwg.mxu0
    %v2165 = vxor.u32 %v2159, 2147483648
    %v2166 = vxor.u32 %v2162, 2147483648
    %v2167 = vmul.f32 %v2165, 1.442695
    %v2168 = vpow.pop %v2167
    %v2169 = vmul.f32 %v2166, 1.442695
    %v2170 = vpow.pop %v2169
    %v2171 = vadd.f32 %v2168, 1.0
    %v2172 = vadd.f32 %v2170, 1.0
    %v2173 = vrcp.pop %v2171
    %v2174 = vmul.f32 1.0, %v2173
    %v2175 = vrcp.pop %v2172
    %v2176 = vmul.f32 1.0, %v2175
    %vm2177 = vcmask 7168
    %2178 = vst.msk [vmem:[%s10] sm:$0xff] %vm2177, %v2174
    %2179 = vst.msk [vmem:[%s10 + $0x8] sm:$0xff] %vm2177, %v2176
    // Predicated region
    $region58: #{tpu_custom_call.1} parent=1 // pred_check
      _
    $region59: #{tpu_custom_call.1} parent=1 // pred_check_branch
      %2181 = sbr.rel (0) target = $region61
    $region60: #{tpu_custom_call.1} parent=1 // pred_region
      _
    $region61: #{tpu_custom_call.1} parent=1 // pred_fallthru
      _
    // Predicated region
    $region62: #{tpu_custom_call.1} parent=1 // pred_check
      _
    $region63: #{tpu_custom_call.1} parent=1 // pred_check_branch
      %2183 = sbr.rel (0) target = $region65
    $region64: #{tpu_custom_call.1} parent=1 // pred_region
      _
    $region65: #{tpu_custom_call.1} parent=1 // pred_fallthru
      _
    %2184 = vsyncpa [#allocation4], 1
    %2185 = vsyncpa [#allocation6], 1
    %2186 = vsyncpa [#allocation9], 1

</llo_original>
